<compile_context>
chip_gen: v7x
topology: tpu7x:2x2x1
jax: 0.10.0
libtpu: 0.0.40
codegen_flags: <defaults>
</compile_context>

<pallas_src>
import jax
import jax.numpy as jnp
from jax.experimental import pallas as pl
from jax.experimental.pallas import tpu as pltpu

DIM = 320          # input feature dim (d1 * d2)
H0 = 1024          # fc0 out
H1 = 100           # fc1 out
H1_PAD = 128       # padded fc1 out
OUT_PAD = 128      # padded fc2 out (real out = 1)
NEG_SLOPE = 0.01   # PyTorch F.leaky_relu default


def _leaky_relu(x):
    return jnp.where(x > 0, x, NEG_SLOPE * x)


def _round_up(n, m):
    return ((n + m - 1) // m) * m


def mlp_kernel(x_ref, w0_ref, b0_ref, w1_ref, b1_ref, w2_ref, b2_ref, o_ref):
    # grad_reverse is identity in the forward pass (it only flips gradients).
    # TODO(synk): GradReverse's gradient negation has no forward-pass effect;
    # training support would need a jax.custom_vjp on the wrapper.
    w_dtype = w0_ref.dtype
    # Cast the f32 input tile to the matmul dtype *inside* the kernel so the
    # cast hides under the MXU instead of being a separate HBM pass upstream.
    x = x_ref[...].astype(w_dtype)                                    # (TB, 320)
    h0 = jnp.dot(x, w0_ref[...], preferred_element_type=jnp.float32) + b0_ref[...]
    h0 = _leaky_relu(h0)                                              # (TB, 1024) f32
    h1 = jnp.dot(h0.astype(w_dtype), w1_ref[...],
                 preferred_element_type=jnp.float32) + b1_ref[...]
    h1 = _leaky_relu(h1)                                              # (TB, 128) f32
    h2 = jnp.dot(h1.astype(w_dtype), w2_ref[...],
                 preferred_element_type=jnp.float32) + b2_ref[...]    # (TB, 128) f32
    # Only column 0 of h2 is real (fc2 has out_features == 1).  Transpose on
    # the XLU (free slot; MXU is the binding unit) so the stored output is a
    # lane-dense (1, TB) slab and sigmoid (EUP) only touches the TB real
    # logits instead of TB*128 padded ones.
    logits = h2.T[0:1, :]                                             # (1, TB) f32
    o_ref[...] = jax.nn.sigmoid(logits)


def init_params(key):
    """Deterministic parameter init mimicking nn.Linear (U[-1/sqrt(fan_in), +])."""
    k0w, k0b, k1w, k1b, k2w, k2b = jax.random.split(key, 6)

    def lin(kw, kb, fan_in, fan_out):
        bound = 1.0 / jnp.sqrt(fan_in)
        w = jax.random.uniform(kw, (fan_in, fan_out), jnp.float32, -bound, bound)
        b = jax.random.uniform(kb, (fan_out,), jnp.float32, -bound, bound)
        return w, b

    w0, b0 = lin(k0w, k0b, DIM, H0)       # (320, 1024), (1024,)
    w1, b1 = lin(k1w, k1b, H0, H1)        # (1024, 100), (100,)
    w2, b2 = lin(k2w, k2b, H1, 1)         # (100, 1),    (1,)
    return (w0, b0, w1, b1, w2, b2)


def prepare_params(params, matmul_dtype=jnp.bfloat16):
    """One-time padding / dtype prep of the weights (outside the hot path).

    Weights are cast to `matmul_dtype` (bf16 by default for MXU throughput);
    biases stay f32 since all elementwise work is done in f32.
    """
    w0, b0, w1, b1, w2, b2 = params
    w0p = w0.astype(matmul_dtype)                                       # (320, 1024)
    w1p = jnp.zeros((H0, H1_PAD), matmul_dtype).at[:, :H1].set(
        w1.astype(matmul_dtype))                                        # (1024, 128)
    w2p = jnp.zeros((H1_PAD, OUT_PAD), matmul_dtype).at[:H1, :1].set(
        w2.astype(matmul_dtype))                                        # (128, 128)
    b0p = b0.reshape(1, H0).astype(jnp.float32)
    b1p = jnp.zeros((1, H1_PAD), jnp.float32).at[0, :H1].set(b1)
    b2p = jnp.zeros((1, OUT_PAD), jnp.float32).at[0, :1].set(b2)
    prepared = (w0p, b0p, w1p, b1p, w2p, b2p)
    return tuple(jax.device_put(p) for p in prepared)


def _pick_batch_tile(B, max_tile):
    """Adaptive batch tile.

    Large batches: big tiles (amortize ~0.35 us per grid step), multiples of
    256 (MXU M granule on v6e/v7x), and capped at ~B/2 so there are always
    >= 2 full tiles for the 'parallel' axis to shard across both v7x
    TensorCores.  Small batches get a single sublane-aligned tile.  tb <= 2048
    keeps the VMEM working set well under v7x's 64 MiB per-core VMEM.
    """
    max_tile = max(256, _round_up(min(max_tile, 2048), 256))
    if B <= max_tile:
        return _round_up(max(B, 8), 8)
    half = max(256, (B // 2) // 256 * 256)
    return min(max_tile, half)


def _mlp_call(xf, prepared, *, tb, n_tiles):
    """Run the MLP over `n_tiles` batch tiles of `tb` rows each of `xf` (f32).

    `xf` may have more rows than n_tiles*tb; the extra rows are never touched.
    Returns an (n_tiles, tb) f32 array of sigmoid outputs (lane-dense layout).
    """
    w0p, b0p, w1p, b1p, w2p, b2p = prepared
    rows = n_tiles * tb
    weight_bytes = sum(int(p.size) * p.dtype.itemsize for p in prepared)
    flops = 2 * rows * (DIM * H0 + H0 * H1_PAD + H1_PAD * OUT_PAD)
    bytes_accessed = rows * DIM * xf.dtype.itemsize + rows * 4 + weight_bytes

    return pl.pallas_call(
        mlp_kernel,
        out_shape=jax.ShapeDtypeStruct((n_tiles, tb), jnp.float32),
        grid=(n_tiles,),
        in_specs=[
            pl.BlockSpec((tb, DIM), lambda i: (i, 0)),        # x: batch-tiled, f32
            pl.BlockSpec((DIM, H0), lambda i: (0, 0)),        # weights: resident
            pl.BlockSpec((1, H0), lambda i: (0, 0)),
            pl.BlockSpec((H0, H1_PAD), lambda i: (0, 0)),
            pl.BlockSpec((1, H1_PAD), lambda i: (0, 0)),
            pl.BlockSpec((H1_PAD, OUT_PAD), lambda i: (0, 0)),
            pl.BlockSpec((1, OUT_PAD), lambda i: (0, 0)),
        ],
        out_specs=pl.BlockSpec((1, tb), lambda i: (i, 0)),    # lane-dense slab
        compiler_params=pltpu.CompilerParams(
            dimension_semantics=("parallel",),   # megacore-shard the batch axis
            vmem_limit_bytes=32 << 20,           # ~12 MiB @ tb=1024, ~24 MiB @ 2048
        ),
        cost_estimate=pl.CostEstimate(
            flops=flops,
            transcendentals=rows,                # sigmoid on the real logits only
            bytes_accessed=bytes_accessed,
        ),
    )(xf, w0p, b0p, w1p, b1p, w2p, b2p)


def gender_classifier_forward(x, prepared, *, batch_tile=1024):
    """x: (B, d1, d2) with d1*d2 == 320. Returns (B, 1) sigmoid outputs (f32)."""
    B = x.shape[0]
    xf = x.reshape(B, -1)
    assert xf.shape[1] == DIM, f"expected flattened dim {DIM}, got {xf.shape[1]}"
    if xf.dtype != jnp.float32:
        xf = xf.astype(jnp.float32)
    # NOTE: no cast to the matmul dtype here -- the kernel casts per tile.

    tb = _pick_batch_tile(B, batch_tile)
    n_full = B // tb
    rem = B - n_full * tb

    pieces = []
    if n_full:
        # Full tiles read straight out of xf; no padding, no extra HBM pass.
        out_main = _mlp_call(xf, prepared, tb=tb, n_tiles=n_full)
        pieces.append(out_main.reshape(-1))
    if rem:
        # Ragged tail: pad a copy of just the last (partial) tile -- never the
        # whole (B, DIM) array -- and run it through a tiny second call.
        rt = _round_up(rem, 8)
        tail = xf[n_full * tb:]
        if rt != rem:
            tail = jnp.pad(tail, ((0, rt - rem), (0, 0)))
        out_tail = _mlp_call(tail, prepared, tb=rt, n_tiles=1)
        pieces.append(out_tail.reshape(-1)[:rem])

    out = pieces[0] if len(pieces) == 1 else jnp.concatenate(pieces)
    return out.reshape(B, 1)


def _reference(x, params):
    w0, b0, w1, b1, w2, b2 = params
    xf = x.reshape(x.shape[0], -1).astype(jnp.float32)
    h = jax.nn.leaky_relu(xf @ w0 + b0, NEG_SLOPE)
    h = jax.nn.leaky_relu(h @ w1 + b1, NEG_SLOPE)
    h = h @ w2 + b2
    return jax.nn.sigmoid(h)


if __name__ == "__main__":
    key = jax.random.PRNGKey(0)
    pkey, k1, k2, k3 = jax.random.split(key, 4)
    params = init_params(pkey)

    # One-time weight prep (outside the hot path).
    prepared_bf16 = prepare_params(params, jnp.bfloat16)
    prepared_f32 = prepare_params(params, jnp.float32)   # exact debug path

    # --- tiny batch, exact f32 path (tail-only call, tight tolerance) ---
    x_small = jax.random.normal(k1, (2, 16, 20), jnp.float32)   # 16*20 == 320
    out_f32 = jax.block_until_ready(
        gender_classifier_forward(x_small, prepared_f32))
    ref_small = _reference(x_small, params)
    assert out_f32.shape == (2, 1), out_f32.shape
    assert jnp.allclose(out_f32, ref_small, atol=1e-5, rtol=1e-5), (
        float(jnp.max(jnp.abs(out_f32 - ref_small))))

    # --- mid batch, bf16 path, single tile (no full tiles, padded tail) ---
    x_mid = jax.random.normal(k2, (300, 16, 20), jnp.float32)
    out_mid = jax.block_until_ready(
        gender_classifier_forward(x_mid, prepared_bf16))
    ref_mid = _reference(x_mid, params)
    assert out_mid.shape == (300, 1), out_mid.shape
    assert jnp.allclose(out_mid, ref_mid, atol=2e-2, rtol=2e-2), (
        float(jnp.max(jnp.abs(out_mid - ref_mid))))

    # --- multi-tile grid (parallel batch axis) + ragged tail, bf16 ---
    x_big = jax.random.normal(k3, (520, 16, 20), jnp.float32)
    out_big = jax.block_until_ready(
        gender_classifier_forward(x_big, prepared_bf16, batch_tile=256))
    ref_big = _reference(x_big, params)
    assert out_big.shape == (520, 1), out_big.shape
    assert jnp.allclose(out_big, ref_big, atol=2e-2, rtol=2e-2), (
        float(jnp.max(jnp.abs(out_big - ref_big))))

    print("KERNEL_OK")
</pallas_src>

<mosaic_0001>
module attributes {stable_mosaic.version = 11 : i64} {
  func.func @mlp_kernel(%arg0: i32, %arg1: memref<8x320xf32, #tpu.memory_space<vmem>>, %arg2: memref<320x1024xf32, #tpu.memory_space<vmem>>, %arg3: memref<1x1024xf32, #tpu.memory_space<vmem>>, %arg4: memref<1024x128xf32, #tpu.memory_space<vmem>>, %arg5: memref<1x128xf32, #tpu.memory_space<vmem>>, %arg6: memref<128x128xf32, #tpu.memory_space<vmem>>, %arg7: memref<1x128xf32, #tpu.memory_space<vmem>>, %arg8: memref<1x8xf32, #tpu.memory_space<vmem>>) attributes {dimension_semantics = [#tpu.dimension_semantics<parallel>], iteration_bounds = array<i64: 1>, scalar_prefetch = 0 : i64, scratch_operands = 0 : i64, tpu.core_type = #tpu.core_type<tc>, window_params = [{transform_indices = @transform_0, window_bounds = array<i64: 8, 320>}, {pipeline_mode = #tpu.pipeline_mode<synchronous>, transform_indices = @transform_1, window_bounds = array<i64: 320, 1024>}, {pipeline_mode = #tpu.pipeline_mode<synchronous>, transform_indices = @transform_2, window_bounds = array<i64: 1, 1024>}, {pipeline_mode = #tpu.pipeline_mode<synchronous>, transform_indices = @transform_3, window_bounds = array<i64: 1024, 128>}, {pipeline_mode = #tpu.pipeline_mode<synchronous>, transform_indices = @transform_4, window_bounds = array<i64: 1, 128>}, {pipeline_mode = #tpu.pipeline_mode<synchronous>, transform_indices = @transform_5, window_bounds = array<i64: 128, 128>}, {pipeline_mode = #tpu.pipeline_mode<synchronous>, transform_indices = @transform_6, window_bounds = array<i64: 1, 128>}, {transform_indices = @transform_7, window_bounds = array<i64: 1, 8>}]} {
    %c0 = arith.constant 0 : index
    %c0_0 = arith.constant 0 : index
    %0 = vector.load %arg1[%c0, %c0_0] : memref<8x320xf32, #tpu.memory_space<vmem>>, vector<8x320xf32>
    %c0_1 = arith.constant 0 : index
    %c0_2 = arith.constant 0 : index
    %1 = vector.load %arg2[%c0_1, %c0_2] : memref<320x1024xf32, #tpu.memory_space<vmem>>, vector<320x1024xf32>
    %cst = arith.constant dense<0.000000e+00> : vector<8x1024xf32>
    %2 = tpu.matmul %0, %1, %cst {dimension_numbers = #tpu.dot_dimension_numbers<[1], [0], [0], [1], [0, 0, 1, 1], [], []>} : vector<8x320xf32>, vector<320x1024xf32>, vector<8x1024xf32> -> vector<8x1024xf32>
    %c0_3 = arith.constant 0 : index
    %c0_4 = arith.constant 0 : index
    %3 = vector.load %arg3[%c0_3, %c0_4] : memref<1x1024xf32, #tpu.memory_space<vmem>>, vector<1x1024xf32>
    %4 = vector.broadcast %3 : vector<1x1024xf32> to vector<8x1024xf32>
    %5 = arith.addf %2, %4 : vector<8x1024xf32>
    %cst_5 = arith.constant 0.000000e+00 : f32
    %6 = vector.broadcast %cst_5 : f32 to vector<8x1024xf32>
    %7 = arith.cmpf ogt, %5, %6 : vector<8x1024xf32>
    %cst_6 = arith.constant 0.00999999977 : f32
    %8 = vector.broadcast %cst_6 : f32 to vector<8x1024xf32>
    %9 = arith.mulf %8, %5 : vector<8x1024xf32>
    %10 = arith.select %7, %5, %9 : vector<8x1024xi1>, vector<8x1024xf32>
    %c0_7 = arith.constant 0 : index
    %c0_8 = arith.constant 0 : index
    %11 = vector.load %arg4[%c0_7, %c0_8] : memref<1024x128xf32, #tpu.memory_space<vmem>>, vector<1024x128xf32>
    %cst_9 = arith.constant dense<0.000000e+00> : vector<8x128xf32>
    %12 = tpu.matmul %10, %11, %cst_9 {dimension_numbers = #tpu.dot_dimension_numbers<[1], [0], [0], [1], [0, 0, 1, 1], [], []>} : vector<8x1024xf32>, vector<1024x128xf32>, vector<8x128xf32> -> vector<8x128xf32>
    %c0_10 = arith.constant 0 : index
    %c0_11 = arith.constant 0 : index
    %13 = vector.load %arg5[%c0_10, %c0_11] : memref<1x128xf32, #tpu.memory_space<vmem>>, vector<1x128xf32>
    %14 = vector.broadcast %13 : vector<1x128xf32> to vector<8x128xf32>
    %15 = arith.addf %12, %14 : vector<8x128xf32>
    %cst_12 = arith.constant 0.000000e+00 : f32
    %16 = vector.broadcast %cst_12 : f32 to vector<8x128xf32>
    %17 = arith.cmpf ogt, %15, %16 : vector<8x128xf32>
    %cst_13 = arith.constant 0.00999999977 : f32
    %18 = vector.broadcast %cst_13 : f32 to vector<8x128xf32>
    %19 = arith.mulf %18, %15 : vector<8x128xf32>
    %20 = arith.select %17, %15, %19 : vector<8x128xi1>, vector<8x128xf32>
    %c0_14 = arith.constant 0 : index
    %c0_15 = arith.constant 0 : index
    %21 = vector.load %arg6[%c0_14, %c0_15] : memref<128x128xf32, #tpu.memory_space<vmem>>, vector<128x128xf32>
    %cst_16 = arith.constant dense<0.000000e+00> : vector<8x128xf32>
    %22 = tpu.matmul %20, %21, %cst_16 {dimension_numbers = #tpu.dot_dimension_numbers<[1], [0], [0], [1], [0, 0, 1, 1], [], []>} : vector<8x128xf32>, vector<128x128xf32>, vector<8x128xf32> -> vector<8x128xf32>
    %c0_17 = arith.constant 0 : index
    %c0_18 = arith.constant 0 : index
    %23 = vector.load %arg7[%c0_17, %c0_18] : memref<1x128xf32, #tpu.memory_space<vmem>>, vector<1x128xf32>
    %24 = vector.broadcast %23 : vector<1x128xf32> to vector<8x128xf32>
    %25 = arith.addf %22, %24 : vector<8x128xf32>
    %26 = tpu.transpose %25, [1, 0] : vector<8x128xf32> -> vector<128x8xf32>
    %27 = vector.extract_strided_slice %26 {offsets = [0, 0], sizes = [1, 8], strides = [1, 1]} : vector<128x8xf32> to vector<1x8xf32>
    %28 = arith.negf %27 : vector<1x8xf32>
    %29 = math.exp %28 : vector<1x8xf32>
    %cst_19 = arith.constant 1.000000e+00 : f32
    %30 = vector.broadcast %cst_19 : f32 to vector<1x8xf32>
    %31 = arith.addf %30, %29 : vector<1x8xf32>
    %32 = arith.divf %30, %31 : vector<1x8xf32>
    %c0_20 = arith.constant 0 : index
    %c0_21 = arith.constant 0 : index
    %33 = vector.load %arg8[%c0_20, %c0_21] : memref<1x8xf32, #tpu.memory_space<vmem>>, vector<1x8xf32>
    tpu.vector_store %arg8[%c0_20, %c0_21], %32 {strides = array<i32>} : memref<1x8xf32, #tpu.memory_space<vmem>>, vector<1x8xf32>,
    return
  }
  func.func @transform_0(%arg0: i32) -> (i32, i32) {
    %c0_i32 = arith.constant 0 : i32
    %c0_i32_0 = arith.constant 0 : i32
    return %arg0, %c0_i32 : i32, i32
  }
  func.func @transform_1(%arg0: i32) -> (i32, i32) {
    %c0_i32 = arith.constant 0 : i32
    %c0_i32_0 = arith.constant 0 : i32
    %c0_i32_1 = arith.constant 0 : i32
    return %c0_i32, %c0_i32_0 : i32, i32
  }
  func.func @transform_2(%arg0: i32) -> (i32, i32) {
    %c0_i32 = arith.constant 0 : i32
    %c0_i32_0 = arith.constant 0 : i32
    %c0_i32_1 = arith.constant 0 : i32
    return %c0_i32, %c0_i32_0 : i32, i32
  }
  func.func @transform_3(%arg0: i32) -> (i32, i32) {
    %c0_i32 = arith.constant 0 : i32
    %c0_i32_0 = arith.constant 0 : i32
    %c0_i32_1 = arith.constant 0 : i32
    return %c0_i32, %c0_i32_0 : i32, i32
  }
  func.func @transform_4(%arg0: i32) -> (i32, i32) {
    %c0_i32 = arith.constant 0 : i32
    %c0_i32_0 = arith.constant 0 : i32
    %c0_i32_1 = arith.constant 0 : i32
    return %c0_i32, %c0_i32_0 : i32, i32
  }
  func.func @transform_5(%arg0: i32) -> (i32, i32) {
    %c0_i32 = arith.constant 0 : i32
    %c0_i32_0 = arith.constant 0 : i32
    %c0_i32_1 = arith.constant 0 : i32
    return %c0_i32, %c0_i32_0 : i32, i32
  }
  func.func @transform_6(%arg0: i32) -> (i32, i32) {
    %c0_i32 = arith.constant 0 : i32
    %c0_i32_0 = arith.constant 0 : i32
    %c0_i32_1 = arith.constant 0 : i32
    return %c0_i32, %c0_i32_0 : i32, i32
  }
  func.func @transform_7(%arg0: i32) -> (i32, i32) {
    %c0_i32 = arith.constant 0 : i32
    %c0_i32_0 = arith.constant 0 : i32
    return %arg0, %c0_i32 : i32, i32
  }
}

</mosaic_0001>

<llo_original>
// kernel: tpu_custom_call.1
$region0: #{tpu_custom_call.1}
  #allocation0 [shape = 'u32[]', space=smem, size = 0x4, offset = 0x4, fixed_abs, tag = 'smem constant byte address 0x4 - core index']
  #allocation1 [shape = 'u32[144,128]{1,0:T(1,128)}', space=vmem, size = 0x12000, scoped, tag = 'internal scratch']
  %s0 = inlined_call_operand.hbm [shape: f32[8,320], index: 0, kind: input, shape index: {}]
  %s1 = inlined_call_operand.hbm [shape: f32[320,1024], index: 1, kind: input, shape index: {}]
  %s2 = inlined_call_operand.hbm [shape: f32[1,1024], index: 2, kind: input, shape index: {}]
  %s3 = inlined_call_operand.hbm [shape: f32[1024,128], index: 3, kind: input, shape index: {}]
  %s4 = inlined_call_operand.hbm [shape: f32[1,128], index: 4, kind: input, shape index: {}]
  %s5 = inlined_call_operand.hbm [shape: f32[128,128], index: 5, kind: input, shape index: {}]
  %s6 = inlined_call_operand.hbm [shape: f32[1,128], index: 6, kind: input, shape index: {}]
  %s7 = inlined_call_operand.hbm [shape: f32[1,8], index: 7, kind: output, shape index: {}]
  %s8 = sld [smem:[#allocation0]]
  $region66: #{tpu_custom_call.1} parent=0
    _
  %s10 = ssub.s32 1, %s8
  %s11 = scalar_select 0, %s10, %s8
  $region1: #{tpu_custom_call.1} parent=0
    #allocation2 [shape = 'u8[12288]{0}', space=vmem, size = 0x3000, scoped, tag = 'input window, operand 0, single buffered']
    #allocation3 [shape = 's32[1]{0}', space=sflag, size = 0x4, scoped, tag = 'scoped memory for tpu_custom_call.1']
    #allocation4 [shape = 's32[1]{0}', space=sflag, size = 0x4, scoped, tag = 'scoped memory for tpu_custom_call.1']
    #allocation5 [shape = 'u8[1310720]{0}', space=vmem, size = 0x140000, scoped, tag = 'input window, operand 1, single buffered']
    #allocation6 [shape = 's32[1]{0}', space=sflag, size = 0x4, scoped, tag = 'scoped memory for tpu_custom_call.1']
    #allocation7 [shape = 'u8[4096]{0}', space=vmem, size = 0x1000, scoped, tag = 'input window, operand 2, single buffered']
    #allocation8 [shape = 'u8[524288]{0}', space=vmem, size = 0x80000, scoped, tag = 'input window, operand 3, single buffered']
    #allocation9 [shape = 's32[1]{0}', space=sflag, size = 0x4, scoped, tag = 'scoped memory for tpu_custom_call.1']
    #allocation10 [shape = 'u8[512]{0}', space=vmem, size = 0x400, scoped, tag = 'input window, operand 4, single buffered']
    #allocation11 [shape = 'u8[65536]{0}', space=vmem, size = 0x10000, scoped, tag = 'input window, operand 5, single buffered']
    #allocation12 [shape = 's32[1]{0}', space=sflag, size = 0x4, scoped, tag = 'scoped memory for tpu_custom_call.1']
    #allocation13 [shape = 'u8[512]{0}', space=vmem, size = 0x400, scoped, tag = 'input window, operand 6, single buffered']
    #allocation14 [shape = 'u8[512]{0}', space=vmem, size = 0x400, scoped, tag = 'output window, operand 0, single buffered']
    %12 = vsyncpa [#allocation3], 0
    %13 = vsyncpa [#allocation6], 0
    %14 = vsyncpa [#allocation9], 0
    %15 = vsyncpa [#allocation12], 0
    %16 = vsyncpa [#allocation4], 0
    // Predicated region
    $region2: #{tpu_custom_call.1} parent=1 // pred_check
      _
    $region3: #{tpu_custom_call.1} parent=1 // pred_check_branch
      %18 = sbr.rel (0) target = $region5
    $region4: #{tpu_custom_call.1} parent=1 // pred_region
      %s20 = ssub.s32 384, 384
      %21 = vsyncadd [#allocation3], %s20
      %s23 = sshll.u32 [#allocation2], 4
      %s24 = int_to_ptr.vmem [resolvable:$true] %s23
      %26 = dma.hbm_to_vmem [thread:$0]  %s0, 384, %s24, [#allocation3]
    $region5: #{tpu_custom_call.1} parent=1 // pred_fallthru
      _
    // Predicated region
    $region6: #{tpu_custom_call.1} parent=1 // pred_check
      _
    $region7: #{tpu_custom_call.1} parent=1 // pred_check_branch
      %28 = sbr.rel (0) target = $region9
    $region8: #{tpu_custom_call.1} parent=1 // pred_region
      %s30 = ssub.s32 40960, 40960
      %31 = vsyncadd [#allocation6], %s30
      %s32 = sshll.u32 [#allocation5], 4
      %s33 = int_to_ptr.vmem [resolvable:$true] %s32
      %38 = dma.hbm_to_vmem [thread:$0]  %s1, 40960, %s33, [#allocation6], 1024, 1024, 64
    $region9: #{tpu_custom_call.1} parent=1 // pred_fallthru
      _
    // Predicated region
    $region10: #{tpu_custom_call.1} parent=1 // pred_check
      _
    $region11: #{tpu_custom_call.1} parent=1 // pred_check_branch
      %40 = sbr.rel (0) target = $region13
    $region12: #{tpu_custom_call.1} parent=1 // pred_region
      %s42 = ssub.s32 128, 128
      %43 = vsyncadd [#allocation6], %s42
      %s45 = sshll.u32 [#allocation7], 4
      %s46 = int_to_ptr.vmem [resolvable:$true] %s45
      %48 = dma.hbm_to_vmem [thread:$0]  %s2, 128, %s46, [#allocation6]
    $region13: #{tpu_custom_call.1} parent=1 // pred_fallthru
      _
    // Predicated region
    $region14: #{tpu_custom_call.1} parent=1 // pred_check
      _
    $region15: #{tpu_custom_call.1} parent=1 // pred_check_branch
      %50 = sbr.rel (0) target = $region17
    $region16: #{tpu_custom_call.1} parent=1 // pred_region
      %s52 = ssub.s32 16384, 16384
      %53 = vsyncadd [#allocation9], %s52
      %s54 = sshll.u32 [#allocation8], 4
      %s55 = int_to_ptr.vmem [resolvable:$true] %s54
      %60 = dma.hbm_to_vmem [thread:$0]  %s3, 16384, %s55, [#allocation9], 128, 128, 8
    $region17: #{tpu_custom_call.1} parent=1 // pred_fallthru
      _
    // Predicated region
    $region18: #{tpu_custom_call.1} parent=1 // pred_check
      _
    $region19: #{tpu_custom_call.1} parent=1 // pred_check_branch
      %62 = sbr.rel (0) target = $region21
    $region20: #{tpu_custom_call.1} parent=1 // pred_region
      %s64 = ssub.s32 16, 16
      %65 = vsyncadd [#allocation9], %s64
      %s67 = sshll.u32 [#allocation10], 4
      %s68 = int_to_ptr.vmem [resolvable:$true] %s67
      %70 = dma.hbm_to_vmem [thread:$0]  %s4, 16, %s68, [#allocation9]
    $region21: #{tpu_custom_call.1} parent=1 // pred_fallthru
      _
    // Predicated region
    $region22: #{tpu_custom_call.1} parent=1 // pred_check
      _
    $region23: #{tpu_custom_call.1} parent=1 // pred_check_branch
      %72 = sbr.rel (0) target = $region25
    $region24: #{tpu_custom_call.1} parent=1 // pred_region
      %s74 = ssub.s32 2048, 2048
      %75 = vsyncadd [#allocation12], %s74
      %s76 = sshll.u32 [#allocation11], 4
      %s77 = int_to_ptr.vmem [resolvable:$true] %s76
      %82 = dma.hbm_to_vmem [thread:$0]  %s5, 2048, %s77, [#allocation12], 128, 128, 8
    $region25: #{tpu_custom_call.1} parent=1 // pred_fallthru
      _
    // Predicated region
    $region26: #{tpu_custom_call.1} parent=1 // pred_check
      _
    $region27: #{tpu_custom_call.1} parent=1 // pred_check_branch
      %84 = sbr.rel (0) target = $region29
    $region28: #{tpu_custom_call.1} parent=1 // pred_region
      %s86 = ssub.s32 16, 16
      %87 = vsyncadd [#allocation12], %s86
      %s89 = sshll.u32 [#allocation13], 4
      %s90 = int_to_ptr.vmem [resolvable:$true] %s89
      %92 = dma.hbm_to_vmem [thread:$0]  %s6, 16, %s90, [#allocation12]
    $region29: #{tpu_custom_call.1} parent=1 // pred_fallthru
      _
    // Predicated region
    $region30: #{tpu_custom_call.1} parent=1 // pred_check
      _
    $region31: #{tpu_custom_call.1} parent=1 // pred_check_branch
      %94 = sbr.rel (0) target = $region33
    $region32: #{tpu_custom_call.1} parent=1 // pred_region
      %95 = dma.done [#allocation3], 384
    $region33: #{tpu_custom_call.1} parent=1 // pred_fallthru
      _
    // Predicated region
    $region34: #{tpu_custom_call.1} parent=1 // pred_check
      _
    $region35: #{tpu_custom_call.1} parent=1 // pred_check_branch
      %97 = sbr.rel (0) target = $region37
    $region36: #{tpu_custom_call.1} parent=1 // pred_region
      %98 = dma.done [#allocation6], 40960
    $region37: #{tpu_custom_call.1} parent=1 // pred_fallthru
      _
    // Predicated region
    $region38: #{tpu_custom_call.1} parent=1 // pred_check
      _
    $region39: #{tpu_custom_call.1} parent=1 // pred_check_branch
      %100 = sbr.rel (0) target = $region41
    $region40: #{tpu_custom_call.1} parent=1 // pred_region
      %101 = dma.done [#allocation6], 128
    $region41: #{tpu_custom_call.1} parent=1 // pred_fallthru
      _
    // Predicated region
    $region42: #{tpu_custom_call.1} parent=1 // pred_check
      _
    $region43: #{tpu_custom_call.1} parent=1 // pred_check_branch
      %103 = sbr.rel (0) target = $region45
    $region44: #{tpu_custom_call.1} parent=1 // pred_region
      %104 = dma.done [#allocation9], 16384
    $region45: #{tpu_custom_call.1} parent=1 // pred_fallthru
      _
    // Predicated region
    $region46: #{tpu_custom_call.1} parent=1 // pred_check
      _
    $region47: #{tpu_custom_call.1} parent=1 // pred_check_branch
      %106 = sbr.rel (0) target = $region49
    $region48: #{tpu_custom_call.1} parent=1 // pred_region
      %107 = dma.done [#allocation9], 16
    $region49: #{tpu_custom_call.1} parent=1 // pred_fallthru
      _
    // Predicated region
    $region50: #{tpu_custom_call.1} parent=1 // pred_check
      _
    $region51: #{tpu_custom_call.1} parent=1 // pred_check_branch
      %109 = sbr.rel (0) target = $region53
    $region52: #{tpu_custom_call.1} parent=1 // pred_region
      %110 = dma.done [#allocation12], 2048
    $region53: #{tpu_custom_call.1} parent=1 // pred_fallthru
      _
    // Predicated region
    $region54: #{tpu_custom_call.1} parent=1 // pred_check
      _
    $region55: #{tpu_custom_call.1} parent=1 // pred_check_branch
      %112 = sbr.rel (0) target = $region57
    $region56: #{tpu_custom_call.1} parent=1 // pred_region
      %113 = dma.done [#allocation12], 16
    $region57: #{tpu_custom_call.1} parent=1 // pred_fallthru
      _
    %v114 = vld [vmem:[#allocation2] sm:$0xff]
    %v115 = vld [vmem:[#allocation2 + $0x8] sm:$0xff]
    %v116 = vld [vmem:[#allocation2 + $0x10] sm:$0xff]
    %v117 = vld [vmem:[#allocation5] sm:$0xff]
    %v118 = vld [vmem:[#allocation5 + $0x8] sm:$0xff]
    %v119 = vld [vmem:[#allocation5 + $0x10] sm:$0xff]
    %v120 = vld [vmem:[#allocation5 + $0x18] sm:$0xff]
    %v121 = vld [vmem:[#allocation5 + $0x20] sm:$0xff]
    %v122 = vld [vmem:[#allocation5 + $0x28] sm:$0xff]
    %v123 = vld [vmem:[#allocation5 + $0x30] sm:$0xff]
    %v124 = vld [vmem:[#allocation5 + $0x38] sm:$0xff]
    %v125 = vld [vmem:[#allocation5 + $0x40] sm:$0xff]
    %v126 = vld [vmem:[#allocation5 + $0x48] sm:$0xff]
    %v127 = vld [vmem:[#allocation5 + $0x50] sm:$0xff]
    %v128 = vld [vmem:[#allocation5 + $0x58] sm:$0xff]
    %v129 = vld [vmem:[#allocation5 + $0x60] sm:$0xff]
    %v130 = vld [vmem:[#allocation5 + $0x68] sm:$0xff]
    %v131 = vld [vmem:[#allocation5 + $0x70] sm:$0xff]
    %v132 = vld [vmem:[#allocation5 + $0x78] sm:$0xff]
    %v133 = vld [vmem:[#allocation5 + $0x80] sm:$0xff]
    %v134 = vld [vmem:[#allocation5 + $0x88] sm:$0xff]
    %v135 = vld [vmem:[#allocation5 + $0x90] sm:$0xff]
    %v136 = vld [vmem:[#allocation5 + $0x98] sm:$0xff]
    %v137 = vld [vmem:[#allocation5 + $0xa0] sm:$0xff]
    %v138 = vld [vmem:[#allocation5 + $0xa8] sm:$0xff]
    %v139 = vld [vmem:[#allocation5 + $0xb0] sm:$0xff]
    %v140 = vld [vmem:[#allocation5 + $0xb8] sm:$0xff]
    %v141 = vld [vmem:[#allocation5 + $0xc0] sm:$0xff]
    %v142 = vld [vmem:[#allocation5 + $0xc8] sm:$0xff]
    %v143 = vld [vmem:[#allocation5 + $0xd0] sm:$0xff]
    %v144 = vld [vmem:[#allocation5 + $0xd8] sm:$0xff]
    %v145 = vld [vmem:[#allocation5 + $0xe0] sm:$0xff]
    %v146 = vld [vmem:[#allocation5 + $0xe8] sm:$0xff]
    %v147 = vld [vmem:[#allocation5 + $0xf0] sm:$0xff]
    %v148 = vld [vmem:[#allocation5 + $0xf8] sm:$0xff]
    %v149 = vld [vmem:[#allocation5 + $0x100] sm:$0xff]
    %v150 = vld [vmem:[#allocation5 + $0x108] sm:$0xff]
    %v151 = vld [vmem:[#allocation5 + $0x110] sm:$0xff]
    %v152 = vld [vmem:[#allocation5 + $0x118] sm:$0xff]
    %v153 = vld [vmem:[#allocation5 + $0x120] sm:$0xff]
    %v154 = vld [vmem:[#allocation5 + $0x128] sm:$0xff]
    %v155 = vld [vmem:[#allocation5 + $0x130] sm:$0xff]
    %v156 = vld [vmem:[#allocation5 + $0x138] sm:$0xff]
    %v157 = vld [vmem:[#allocation5 + $0x140] sm:$0xff]
    %v158 = vld [vmem:[#allocation5 + $0x148] sm:$0xff]
    %v159 = vld [vmem:[#allocation5 + $0x150] sm:$0xff]
    %v160 = vld [vmem:[#allocation5 + $0x158] sm:$0xff]
    %v161 = vld [vmem:[#allocation5 + $0x160] sm:$0xff]
    %v162 = vld [vmem:[#allocation5 + $0x168] sm:$0xff]
    %v163 = vld [vmem:[#allocation5 + $0x170] sm:$0xff]
    %v164 = vld [vmem:[#allocation5 + $0x178] sm:$0xff]
    %v165 = vld [vmem:[#allocation5 + $0x180] sm:$0xff]
    %v166 = vld [vmem:[#allocation5 + $0x188] sm:$0xff]
    %v167 = vld [vmem:[#allocation5 + $0x190] sm:$0xff]
    %v168 = vld [vmem:[#allocation5 + $0x198] sm:$0xff]
    %v169 = vld [vmem:[#allocation5 + $0x1a0] sm:$0xff]
    %v170 = vld [vmem:[#allocation5 + $0x1a8] sm:$0xff]
    %v171 = vld [vmem:[#allocation5 + $0x1b0] sm:$0xff]
    %v172 = vld [vmem:[#allocation5 + $0x1b8] sm:$0xff]
    %v173 = vld [vmem:[#allocation5 + $0x1c0] sm:$0xff]
    %v174 = vld [vmem:[#allocation5 + $0x1c8] sm:$0xff]
    %v175 = vld [vmem:[#allocation5 + $0x1d0] sm:$0xff]
    %v176 = vld [vmem:[#allocation5 + $0x1d8] sm:$0xff]
    %v177 = vld [vmem:[#allocation5 + $0x1e0] sm:$0xff]
    %v178 = vld [vmem:[#allocation5 + $0x1e8] sm:$0xff]
    %v179 = vld [vmem:[#allocation5 + $0x1f0] sm:$0xff]
    %v180 = vld [vmem:[#allocation5 + $0x1f8] sm:$0xff]
    %v181 = vld [vmem:[#allocation5 + $0x200] sm:$0xff]
    %v182 = vld [vmem:[#allocation5 + $0x208] sm:$0xff]
    %v183 = vld [vmem:[#allocation5 + $0x210] sm:$0xff]
    %v184 = vld [vmem:[#allocation5 + $0x218] sm:$0xff]
    %v185 = vld [vmem:[#allocation5 + $0x220] sm:$0xff]
    %v186 = vld [vmem:[#allocation5 + $0x228] sm:$0xff]
    %v187 = vld [vmem:[#allocation5 + $0x230] sm:$0xff]
    %v188 = vld [vmem:[#allocation5 + $0x238] sm:$0xff]
    %v189 = vld [vmem:[#allocation5 + $0x240] sm:$0xff]
    %v190 = vld [vmem:[#allocation5 + $0x248] sm:$0xff]
    %v191 = vld [vmem:[#allocation5 + $0x250] sm:$0xff]
    %v192 = vld [vmem:[#allocation5 + $0x258] sm:$0xff]
    %v193 = vld [vmem:[#allocation5 + $0x260] sm:$0xff]
    %v194 = vld [vmem:[#allocation5 + $0x268] sm:$0xff]
    %v195 = vld [vmem:[#allocation5 + $0x270] sm:$0xff]
    %v196 = vld [vmem:[#allocation5 + $0x278] sm:$0xff]
    %v197 = vld [vmem:[#allocation5 + $0x280] sm:$0xff]
    %v198 = vld [vmem:[#allocation5 + $0x288] sm:$0xff]
    %v199 = vld [vmem:[#allocation5 + $0x290] sm:$0xff]
    %v200 = vld [vmem:[#allocation5 + $0x298] sm:$0xff]
    %v201 = vld [vmem:[#allocation5 + $0x2a0] sm:$0xff]
    %v202 = vld [vmem:[#allocation5 + $0x2a8] sm:$0xff]
    %v203 = vld [vmem:[#allocation5 + $0x2b0] sm:$0xff]
    %v204 = vld [vmem:[#allocation5 + $0x2b8] sm:$0xff]
    %v205 = vld [vmem:[#allocation5 + $0x2c0] sm:$0xff]
    %v206 = vld [vmem:[#allocation5 + $0x2c8] sm:$0xff]
    %v207 = vld [vmem:[#allocation5 + $0x2d0] sm:$0xff]
    %v208 = vld [vmem:[#allocation5 + $0x2d8] sm:$0xff]
    %v209 = vld [vmem:[#allocation5 + $0x2e0] sm:$0xff]
    %v210 = vld [vmem:[#allocation5 + $0x2e8] sm:$0xff]
    %v211 = vld [vmem:[#allocation5 + $0x2f0] sm:$0xff]
    %v212 = vld [vmem:[#allocation5 + $0x2f8] sm:$0xff]
    %v213 = vld [vmem:[#allocation5 + $0x300] sm:$0xff]
    %v214 = vld [vmem:[#allocation5 + $0x308] sm:$0xff]
    %v215 = vld [vmem:[#allocation5 + $0x310] sm:$0xff]
    %v216 = vld [vmem:[#allocation5 + $0x318] sm:$0xff]
    %v217 = vld [vmem:[#allocation5 + $0x320] sm:$0xff]
    %v218 = vld [vmem:[#allocation5 + $0x328] sm:$0xff]
    %v219 = vld [vmem:[#allocation5 + $0x330] sm:$0xff]
    %v220 = vld [vmem:[#allocation5 + $0x338] sm:$0xff]
    %v221 = vld [vmem:[#allocation5 + $0x340] sm:$0xff]
    %v222 = vld [vmem:[#allocation5 + $0x348] sm:$0xff]
    %v223 = vld [vmem:[#allocation5 + $0x350] sm:$0xff]
    %v224 = vld [vmem:[#allocation5 + $0x358] sm:$0xff]
    %v225 = vld [vmem:[#allocation5 + $0x360] sm:$0xff]
    %v226 = vld [vmem:[#allocation5 + $0x368] sm:$0xff]
    %v227 = vld [vmem:[#allocation5 + $0x370] sm:$0xff]
    %v228 = vld [vmem:[#allocation5 + $0x378] sm:$0xff]
    %v229 = vld [vmem:[#allocation5 + $0x380] sm:$0xff]
    %v230 = vld [vmem:[#allocation5 + $0x388] sm:$0xff]
    %v231 = vld [vmem:[#allocation5 + $0x390] sm:$0xff]
    %v232 = vld [vmem:[#allocation5 + $0x398] sm:$0xff]
    %v233 = vld [vmem:[#allocation5 + $0x3a0] sm:$0xff]
    %v234 = vld [vmem:[#allocation5 + $0x3a8] sm:$0xff]
    %v235 = vld [vmem:[#allocation5 + $0x3b0] sm:$0xff]
    %v236 = vld [vmem:[#allocation5 + $0x3b8] sm:$0xff]
    %v237 = vld [vmem:[#allocation5 + $0x3c0] sm:$0xff]
    %v238 = vld [vmem:[#allocation5 + $0x3c8] sm:$0xff]
    %v239 = vld [vmem:[#allocation5 + $0x3d0] sm:$0xff]
    %v240 = vld [vmem:[#allocation5 + $0x3d8] sm:$0xff]
    %v241 = vld [vmem:[#allocation5 + $0x3e0] sm:$0xff]
    %v242 = vld [vmem:[#allocation5 + $0x3e8] sm:$0xff]
    %v243 = vld [vmem:[#allocation5 + $0x3f0] sm:$0xff]
    %v244 = vld [vmem:[#allocation5 + $0x3f8] sm:$0xff]
    %v245 = vld [vmem:[#allocation5 + $0x400] sm:$0xff]
    %v246 = vld [vmem:[#allocation5 + $0x408] sm:$0xff]
    %v247 = vld [vmem:[#allocation5 + $0x410] sm:$0xff]
    %v248 = vld [vmem:[#allocation5 + $0x418] sm:$0xff]
    %v249 = vld [vmem:[#allocation5 + $0x420] sm:$0xff]
    %v250 = vld [vmem:[#allocation5 + $0x428] sm:$0xff]
    %v251 = vld [vmem:[#allocation5 + $0x430] sm:$0xff]
    %v252 = vld [vmem:[#allocation5 + $0x438] sm:$0xff]
    %v253 = vld [vmem:[#allocation5 + $0x440] sm:$0xff]
    %v254 = vld [vmem:[#allocation5 + $0x448] sm:$0xff]
    %v255 = vld [vmem:[#allocation5 + $0x450] sm:$0xff]
    %v256 = vld [vmem:[#allocation5 + $0x458] sm:$0xff]
    %v257 = vld [vmem:[#allocation5 + $0x460] sm:$0xff]
    %v258 = vld [vmem:[#allocation5 + $0x468] sm:$0xff]
    %v259 = vld [vmem:[#allocation5 + $0x470] sm:$0xff]
    %v260 = vld [vmem:[#allocation5 + $0x478] sm:$0xff]
    %v261 = vld [vmem:[#allocation5 + $0x480] sm:$0xff]
    %v262 = vld [vmem:[#allocation5 + $0x488] sm:$0xff]
    %v263 = vld [vmem:[#allocation5 + $0x490] sm:$0xff]
    %v264 = vld [vmem:[#allocation5 + $0x498] sm:$0xff]
    %v265 = vld [vmem:[#allocation5 + $0x4a0] sm:$0xff]
    %v266 = vld [vmem:[#allocation5 + $0x4a8] sm:$0xff]
    %v267 = vld [vmem:[#allocation5 + $0x4b0] sm:$0xff]
    %v268 = vld [vmem:[#allocation5 + $0x4b8] sm:$0xff]
    %v269 = vld [vmem:[#allocation5 + $0x4c0] sm:$0xff]
    %v270 = vld [vmem:[#allocation5 + $0x4c8] sm:$0xff]
    %v271 = vld [vmem:[#allocation5 + $0x4d0] sm:$0xff]
    %v272 = vld [vmem:[#allocation5 + $0x4d8] sm:$0xff]
    %v273 = vld [vmem:[#allocation5 + $0x4e0] sm:$0xff]
    %v274 = vld [vmem:[#allocation5 + $0x4e8] sm:$0xff]
    %v275 = vld [vmem:[#allocation5 + $0x4f0] sm:$0xff]
    %v276 = vld [vmem:[#allocation5 + $0x4f8] sm:$0xff]
    %v277 = vld [vmem:[#allocation5 + $0x500] sm:$0xff]
    %v278 = vld [vmem:[#allocation5 + $0x508] sm:$0xff]
    %v279 = vld [vmem:[#allocation5 + $0x510] sm:$0xff]
    %v280 = vld [vmem:[#allocation5 + $0x518] sm:$0xff]
    %v281 = vld [vmem:[#allocation5 + $0x520] sm:$0xff]
    %v282 = vld [vmem:[#allocation5 + $0x528] sm:$0xff]
    %v283 = vld [vmem:[#allocation5 + $0x530] sm:$0xff]
    %v284 = vld [vmem:[#allocation5 + $0x538] sm:$0xff]
    %v285 = vld [vmem:[#allocation5 + $0x540] sm:$0xff]
    %v286 = vld [vmem:[#allocation5 + $0x548] sm:$0xff]
    %v287 = vld [vmem:[#allocation5 + $0x550] sm:$0xff]
    %v288 = vld [vmem:[#allocation5 + $0x558] sm:$0xff]
    %v289 = vld [vmem:[#allocation5 + $0x560] sm:$0xff]
    %v290 = vld [vmem:[#allocation5 + $0x568] sm:$0xff]
    %v291 = vld [vmem:[#allocation5 + $0x570] sm:$0xff]
    %v292 = vld [vmem:[#allocation5 + $0x578] sm:$0xff]
    %v293 = vld [vmem:[#allocation5 + $0x580] sm:$0xff]
    %v294 = vld [vmem:[#allocation5 + $0x588] sm:$0xff]
    %v295 = vld [vmem:[#allocation5 + $0x590] sm:$0xff]
    %v296 = vld [vmem:[#allocation5 + $0x598] sm:$0xff]
    %v297 = vld [vmem:[#allocation5 + $0x5a0] sm:$0xff]
    %v298 = vld [vmem:[#allocation5 + $0x5a8] sm:$0xff]
    %v299 = vld [vmem:[#allocation5 + $0x5b0] sm:$0xff]
    %v300 = vld [vmem:[#allocation5 + $0x5b8] sm:$0xff]
    %v301 = vld [vmem:[#allocation5 + $0x5c0] sm:$0xff]
    %v302 = vld [vmem:[#allocation5 + $0x5c8] sm:$0xff]
    %v303 = vld [vmem:[#allocation5 + $0x5d0] sm:$0xff]
    %v304 = vld [vmem:[#allocation5 + $0x5d8] sm:$0xff]
    %v305 = vld [vmem:[#allocation5 + $0x5e0] sm:$0xff]
    %v306 = vld [vmem:[#allocation5 + $0x5e8] sm:$0xff]
    %v307 = vld [vmem:[#allocation5 + $0x5f0] sm:$0xff]
    %v308 = vld [vmem:[#allocation5 + $0x5f8] sm:$0xff]
    %v309 = vld [vmem:[#allocation5 + $0x600] sm:$0xff]
    %v310 = vld [vmem:[#allocation5 + $0x608] sm:$0xff]
    %v311 = vld [vmem:[#allocation5 + $0x610] sm:$0xff]
    %v312 = vld [vmem:[#allocation5 + $0x618] sm:$0xff]
    %v313 = vld [vmem:[#allocation5 + $0x620] sm:$0xff]
    %v314 = vld [vmem:[#allocation5 + $0x628] sm:$0xff]
    %v315 = vld [vmem:[#allocation5 + $0x630] sm:$0xff]
    %v316 = vld [vmem:[#allocation5 + $0x638] sm:$0xff]
    %v317 = vld [vmem:[#allocation5 + $0x640] sm:$0xff]
    %v318 = vld [vmem:[#allocation5 + $0x648] sm:$0xff]
    %v319 = vld [vmem:[#allocation5 + $0x650] sm:$0xff]
    %v320 = vld [vmem:[#allocation5 + $0x658] sm:$0xff]
    %v321 = vld [vmem:[#allocation5 + $0x660] sm:$0xff]
    %v322 = vld [vmem:[#allocation5 + $0x668] sm:$0xff]
    %v323 = vld [vmem:[#allocation5 + $0x670] sm:$0xff]
    %v324 = vld [vmem:[#allocation5 + $0x678] sm:$0xff]
    %v325 = vld [vmem:[#allocation5 + $0x680] sm:$0xff]
    %v326 = vld [vmem:[#allocation5 + $0x688] sm:$0xff]
    %v327 = vld [vmem:[#allocation5 + $0x690] sm:$0xff]
    %v328 = vld [vmem:[#allocation5 + $0x698] sm:$0xff]
    %v329 = vld [vmem:[#allocation5 + $0x6a0] sm:$0xff]
    %v330 = vld [vmem:[#allocation5 + $0x6a8] sm:$0xff]
    %v331 = vld [vmem:[#allocation5 + $0x6b0] sm:$0xff]
    %v332 = vld [vmem:[#allocation5 + $0x6b8] sm:$0xff]
    %v333 = vld [vmem:[#allocation5 + $0x6c0] sm:$0xff]
    %v334 = vld [vmem:[#allocation5 + $0x6c8] sm:$0xff]
    %v335 = vld [vmem:[#allocation5 + $0x6d0] sm:$0xff]
    %v336 = vld [vmem:[#allocation5 + $0x6d8] sm:$0xff]
    %v337 = vld [vmem:[#allocation5 + $0x6e0] sm:$0xff]
    %v338 = vld [vmem:[#allocation5 + $0x6e8] sm:$0xff]
    %v339 = vld [vmem:[#allocation5 + $0x6f0] sm:$0xff]
    %v340 = vld [vmem:[#allocation5 + $0x6f8] sm:$0xff]
    %v341 = vld [vmem:[#allocation5 + $0x700] sm:$0xff]
    %v342 = vld [vmem:[#allocation5 + $0x708] sm:$0xff]
    %v343 = vld [vmem:[#allocation5 + $0x710] sm:$0xff]
    %v344 = vld [vmem:[#allocation5 + $0x718] sm:$0xff]
    %v345 = vld [vmem:[#allocation5 + $0x720] sm:$0xff]
    %v346 = vld [vmem:[#allocation5 + $0x728] sm:$0xff]
    %v347 = vld [vmem:[#allocation5 + $0x730] sm:$0xff]
    %v348 = vld [vmem:[#allocation5 + $0x738] sm:$0xff]
    %v349 = vld [vmem:[#allocation5 + $0x740] sm:$0xff]
    %v350 = vld [vmem:[#allocation5 + $0x748] sm:$0xff]
    %v351 = vld [vmem:[#allocation5 + $0x750] sm:$0xff]
    %v352 = vld [vmem:[#allocation5 + $0x758] sm:$0xff]
    %v353 = vld [vmem:[#allocation5 + $0x760] sm:$0xff]
    %v354 = vld [vmem:[#allocation5 + $0x768] sm:$0xff]
    %v355 = vld [vmem:[#allocation5 + $0x770] sm:$0xff]
    %v356 = vld [vmem:[#allocation5 + $0x778] sm:$0xff]
    %v357 = vld [vmem:[#allocation5 + $0x780] sm:$0xff]
    %v358 = vld [vmem:[#allocation5 + $0x788] sm:$0xff]
    %v359 = vld [vmem:[#allocation5 + $0x790] sm:$0xff]
    %v360 = vld [vmem:[#allocation5 + $0x798] sm:$0xff]
    %v361 = vld [vmem:[#allocation5 + $0x7a0] sm:$0xff]
    %v362 = vld [vmem:[#allocation5 + $0x7a8] sm:$0xff]
    %v363 = vld [vmem:[#allocation5 + $0x7b0] sm:$0xff]
    %v364 = vld [vmem:[#allocation5 + $0x7b8] sm:$0xff]
    %v365 = vld [vmem:[#allocation5 + $0x7c0] sm:$0xff]
    %v366 = vld [vmem:[#allocation5 + $0x7c8] sm:$0xff]
    %v367 = vld [vmem:[#allocation5 + $0x7d0] sm:$0xff]
    %v368 = vld [vmem:[#allocation5 + $0x7d8] sm:$0xff]
    %v369 = vld [vmem:[#allocation5 + $0x7e0] sm:$0xff]
    %v370 = vld [vmem:[#allocation5 + $0x7e8] sm:$0xff]
    %v371 = vld [vmem:[#allocation5 + $0x7f0] sm:$0xff]
    %v372 = vld [vmem:[#allocation5 + $0x7f8] sm:$0xff]
    %v373 = vld [vmem:[#allocation5 + $0x800] sm:$0xff]
    %v374 = vld [vmem:[#allocation5 + $0x808] sm:$0xff]
    %v375 = vld [vmem:[#allocation5 + $0x810] sm:$0xff]
    %v376 = vld [vmem:[#allocation5 + $0x818] sm:$0xff]
    %v377 = vld [vmem:[#allocation5 + $0x820] sm:$0xff]
    %v378 = vld [vmem:[#allocation5 + $0x828] sm:$0xff]
    %v379 = vld [vmem:[#allocation5 + $0x830] sm:$0xff]
    %v380 = vld [vmem:[#allocation5 + $0x838] sm:$0xff]
    %v381 = vld [vmem:[#allocation5 + $0x840] sm:$0xff]
    %v382 = vld [vmem:[#allocation5 + $0x848] sm:$0xff]
    %v383 = vld [vmem:[#allocation5 + $0x850] sm:$0xff]
    %v384 = vld [vmem:[#allocation5 + $0x858] sm:$0xff]
    %v385 = vld [vmem:[#allocation5 + $0x860] sm:$0xff]
    %v386 = vld [vmem:[#allocation5 + $0x868] sm:$0xff]
    %v387 = vld [vmem:[#allocation5 + $0x870] sm:$0xff]
    %v388 = vld [vmem:[#allocation5 + $0x878] sm:$0xff]
    %v389 = vld [vmem:[#allocation5 + $0x880] sm:$0xff]
    %v390 = vld [vmem:[#allocation5 + $0x888] sm:$0xff]
    %v391 = vld [vmem:[#allocation5 + $0x890] sm:$0xff]
    %v392 = vld [vmem:[#allocation5 + $0x898] sm:$0xff]
    %v393 = vld [vmem:[#allocation5 + $0x8a0] sm:$0xff]
    %v394 = vld [vmem:[#allocation5 + $0x8a8] sm:$0xff]
    %v395 = vld [vmem:[#allocation5 + $0x8b0] sm:$0xff]
    %v396 = vld [vmem:[#allocation5 + $0x8b8] sm:$0xff]
    %v397 = vld [vmem:[#allocation5 + $0x8c0] sm:$0xff]
    %v398 = vld [vmem:[#allocation5 + $0x8c8] sm:$0xff]
    %v399 = vld [vmem:[#allocation5 + $0x8d0] sm:$0xff]
    %v400 = vld [vmem:[#allocation5 + $0x8d8] sm:$0xff]
    %v401 = vld [vmem:[#allocation5 + $0x8e0] sm:$0xff]
    %v402 = vld [vmem:[#allocation5 + $0x8e8] sm:$0xff]
    %v403 = vld [vmem:[#allocation5 + $0x8f0] sm:$0xff]
    %v404 = vld [vmem:[#allocation5 + $0x8f8] sm:$0xff]
    %v405 = vld [vmem:[#allocation5 + $0x900] sm:$0xff]
    %v406 = vld [vmem:[#allocation5 + $0x908] sm:$0xff]
    %v407 = vld [vmem:[#allocation5 + $0x910] sm:$0xff]
    %v408 = vld [vmem:[#allocation5 + $0x918] sm:$0xff]
    %v409 = vld [vmem:[#allocation5 + $0x920] sm:$0xff]
    %v410 = vld [vmem:[#allocation5 + $0x928] sm:$0xff]
    %v411 = vld [vmem:[#allocation5 + $0x930] sm:$0xff]
    %v412 = vld [vmem:[#allocation5 + $0x938] sm:$0xff]
    %v413 = vld [vmem:[#allocation5 + $0x940] sm:$0xff]
    %v414 = vld [vmem:[#allocation5 + $0x948] sm:$0xff]
    %v415 = vld [vmem:[#allocation5 + $0x950] sm:$0xff]
    %v416 = vld [vmem:[#allocation5 + $0x958] sm:$0xff]
    %v417 = vld [vmem:[#allocation5 + $0x960] sm:$0xff]
    %v418 = vld [vmem:[#allocation5 + $0x968] sm:$0xff]
    %v419 = vld [vmem:[#allocation5 + $0x970] sm:$0xff]
    %v420 = vld [vmem:[#allocation5 + $0x978] sm:$0xff]
    %v421 = vld [vmem:[#allocation5 + $0x980] sm:$0xff]
    %v422 = vld [vmem:[#allocation5 + $0x988] sm:$0xff]
    %v423 = vld [vmem:[#allocation5 + $0x990] sm:$0xff]
    %v424 = vld [vmem:[#allocation5 + $0x998] sm:$0xff]
    %v425 = vld [vmem:[#allocation5 + $0x9a0] sm:$0xff]
    %v426 = vld [vmem:[#allocation5 + $0x9a8] sm:$0xff]
    %v427 = vld [vmem:[#allocation5 + $0x9b0] sm:$0xff]
    %v428 = vld [vmem:[#allocation5 + $0x9b8] sm:$0xff]
    %v429 = vld [vmem:[#allocation5 + $0x9c0] sm:$0xff]
    %v430 = vld [vmem:[#allocation5 + $0x9c8] sm:$0xff]
    %v431 = vld [vmem:[#allocation5 + $0x9d0] sm:$0xff]
    %v432 = vld [vmem:[#allocation5 + $0x9d8] sm:$0xff]
    %v433 = vld [vmem:[#allocation5 + $0x9e0] sm:$0xff]
    %v434 = vld [vmem:[#allocation5 + $0x9e8] sm:$0xff]
    %v435 = vld [vmem:[#allocation5 + $0x9f0] sm:$0xff]
    %v436 = vld [vmem:[#allocation5 + $0x9f8] sm:$0xff]
    %v437 = vld [vmem:[#allocation7] sm:$0xff]
    %v439 = vlaneseq
    %v440 = vshrl.u32 %v439, 7
    %v441 = vsub.s32 0, %v440
    %v442 = vrot.slane %v437, %v441
    %v443 = vlaneseq
    %v444 = vshrl.u32 %v443, 7
    %v445 = vsub.s32 1, %v444
    %v446 = vrot.slane %v437, %v445
    %v447 = vlaneseq
    %v448 = vshrl.u32 %v447, 7
    %v449 = vsub.s32 2, %v448
    %v450 = vrot.slane %v437, %v449
    %v451 = vlaneseq
    %v452 = vshrl.u32 %v451, 7
    %v453 = vsub.s32 3, %v452
    %v454 = vrot.slane %v437, %v453
    %v455 = vlaneseq
    %v456 = vshrl.u32 %v455, 7
    %v457 = vsub.s32 4, %v456
    %v458 = vrot.slane %v437, %v457
    %v459 = vlaneseq
    %v460 = vshrl.u32 %v459, 7
    %v461 = vsub.s32 5, %v460
    %v462 = vrot.slane %v437, %v461
    %v463 = vlaneseq
    %v464 = vshrl.u32 %v463, 7
    %v465 = vsub.s32 6, %v464
    %v466 = vrot.slane %v437, %v465
    %v467 = vlaneseq
    %v468 = vshrl.u32 %v467, 7
    %v469 = vsub.s32 7, %v468
    %v470 = vrot.slane %v437, %v469
    %vm479 = vcmask 523264
    %v481 = vsel %vm479, %v116, 0
    %483 = vmatprep.subr.mxu0 %v118
    %484 = vmatpush1.msra.mxu0 %v117
    %485 = vmatprep.subr.mxu0 %v126
    %486 = vmatpush1.msra.mxu0 %v125
    %487 = vmatprep.subr.mxu0 %v134
    %488 = vmatpush1.msra.mxu0 %v133
    %489 = vmatprep.subr.mxu0 %v142
    %490 = vmatpush1.msra.mxu0 %v141
    %491 = vmatprep.subr.mxu0 %v150
    %492 = vmatpush1.msra.mxu0 %v149
    %493 = vmatprep.subr.mxu0 %v158
    %494 = vmatpush1.msra.mxu0 %v157
    %495 = vmatprep.subr.mxu0 %v166
    %496 = vmatpush1.msra.mxu0 %v165
    %497 = vmatprep.subr.mxu0 %v174
    %498 = vmatpush1.msra.mxu0 %v173
    %499 = vmatprep.subr.mxu0 %v182
    %500 = vmatpush1.msra.mxu0 %v181
    %501 = vmatprep.subr.mxu0 %v190
    %502 = vmatpush1.msra.mxu0 %v189
    %503 = vmatprep.subr.mxu0 %v198
    %504 = vmatpush1.msra.mxu0 %v197
    %505 = vmatprep.subr.mxu0 %v206
    %506 = vmatpush1.msra.mxu0 %v205
    %507 = vmatprep.subr.mxu0 %v214
    %508 = vmatpush1.msra.mxu0 %v213
    %509 = vmatprep.subr.mxu0 %v222
    %510 = vmatpush1.msra.mxu0 %v221
    %511 = vmatprep.subr.mxu0 %v230
    %512 = vmatpush1.msra.mxu0 %v229
    %513 = vmatprep.subr.mxu0 %v238
    %514 = vmatpush1.msra.mxu0 %v237
    %515 = vmatprep.subr.mxu0 %v246
    %516 = vmatpush1.msra.mxu0 %v245
    %517 = vmatprep.subr.mxu0 %v254
    %518 = vmatpush1.msra.mxu0 %v253
    %519 = vmatprep.subr.mxu0 %v262
    %520 = vmatpush1.msra.mxu0 %v261
    %521 = vmatprep.subr.mxu0 %v270
    %522 = vmatpush1.msra.mxu0 %v269
    %523 = vmatprep.subr.mxu0 %v278
    %524 = vmatpush1.msra.mxu0 %v277
    %525 = vmatprep.subr.mxu0 %v286
    %526 = vmatpush1.msra.mxu0 %v285
    %527 = vmatprep.subr.mxu0 %v294
    %528 = vmatpush1.msra.mxu0 %v293
    %529 = vmatprep.subr.mxu0 %v302
    %530 = vmatpush1.msra.mxu0 %v301
    %531 = vmatprep.subr.mxu0 %v310
    %532 = vmatpush1.msra.mxu0 %v309
    %533 = vmatprep.subr.mxu0 %v318
    %534 = vmatpush1.msra.mxu0 %v317
    %535 = vmatprep.subr.mxu0 %v326
    %536 = vmatpush1.msra.mxu0 %v325
    %537 = vmatprep.subr.mxu0 %v334
    %538 = vmatpush1.msra.mxu0 %v333
    %539 = vmatprep.subr.mxu0 %v342
    %540 = vmatpush1.msra.mxu0 %v341
    %541 = vmatprep.subr.mxu0 %v350
    %542 = vmatpush1.msra.mxu0 %v349
    %543 = vmatprep.subr.mxu0 %v358
    %544 = vmatpush1.msra.mxu0 %v357
    %545 = vmatprep.subr.mxu0 %v366
    %546 = vmatpush1.msra.mxu0 %v365
    %547 = vmatprep.mubr.f32.mxu0 %v115
    %548 = vmatmul.mubr.f32.gmra.mrb[0].mxu0 %v114
    %v549 = vpop.f32.mrb[0].mxu0
    %v550 = vadd.f32 %v442, %v549
    %v551 = vpop.f32.mrb[0].mxu0
    %v552 = vadd.f32 %v446, %v551
    %553 = vdwg.mxu0
    %554 = vmatprep.subr.mxu0 %v374
    %555 = vmatpush1.msra.mxu0 %v373
    %556 = vmatprep.subr.mxu0 %v382
    %557 = vmatpush1.msra.mxu0 %v381
    %558 = vmatprep.subr.mxu0 %v390
    %559 = vmatpush1.msra.mxu0 %v389
    %560 = vmatprep.subr.mxu0 %v398
    %561 = vmatpush1.msra.mxu0 %v397
    %562 = vmatprep.subr.mxu0 %v406
    %563 = vmatpush1.msra.mxu0 %v405
    %564 = vmatprep.subr.mxu0 %v414
    %565 = vmatpush1.msra.mxu0 %v413
    %566 = vmatprep.subr.mxu0 %v422
    %567 = vmatpush1.msra.mxu0 %v421
    %568 = vmatprep.subr.mxu0 %v430
    %569 = vmatpush1.msra.mxu0 %v429
    %570 = vmatprep.subr.mxu0 0.0
    %571 = vmatpush1.msra.mxu0 0.0
    %572 = vmatprep.subr.mxu0 0.0
    %573 = vmatpush1.msra.mxu0 0.0
    %574 = vmatprep.subr.mxu0 0.0
    %575 = vmatpush1.msra.mxu0 0.0
    %576 = vmatprep.subr.mxu0 0.0
    %577 = vmatpush1.msra.mxu0 0.0
    %578 = vmatprep.subr.mxu0 0.0
    %579 = vmatpush1.msra.mxu0 0.0
    %580 = vmatprep.subr.mxu0 0.0
    %581 = vmatpush1.msra.mxu0 0.0
    %582 = vmatprep.subr.mxu0 0.0
    %583 = vmatpush1.msra.mxu0 0.0
    %584 = vmatprep.subr.mxu0 0.0
    %585 = vmatpush1.msra.mxu0 0.0
    %586 = vmatprep.subr.mxu0 0.0
    %587 = vmatpush1.msra.mxu0 0.0
    %588 = vmatprep.subr.mxu0 0.0
    %589 = vmatpush1.msra.mxu0 0.0
    %590 = vmatprep.subr.mxu0 0.0
    %591 = vmatpush1.msra.mxu0 0.0
    %592 = vmatprep.subr.mxu0 0.0
    %593 = vmatpush1.msra.mxu0 0.0
    %594 = vmatprep.subr.mxu0 0.0
    %595 = vmatpush1.msra.mxu0 0.0
    %596 = vmatprep.subr.mxu0 0.0
    %597 = vmatpush1.msra.mxu0 0.0
    %598 = vmatprep.subr.mxu0 0.0
    %599 = vmatpush1.msra.mxu0 0.0
    %600 = vmatprep.subr.mxu0 0.0
    %601 = vmatpush1.msra.mxu0 0.0
    %602 = vmatprep.subr.mxu0 0.0
    %603 = vmatpush1.msra.mxu0 0.0
    %604 = vmatprep.subr.mxu0 0.0
    %605 = vmatpush1.msra.mxu0 0.0
    %606 = vmatprep.subr.mxu0 0.0
    %607 = vmatpush1.msra.mxu0 0.0
    %608 = vmatprep.subr.mxu0 0.0
    %609 = vmatpush1.msra.mxu0 0.0
    %610 = vmatprep.subr.mxu0 0.0
    %611 = vmatpush1.msra.mxu0 0.0
    %612 = vmatprep.subr.mxu0 0.0
    %613 = vmatpush1.msra.mxu0 0.0
    %614 = vmatprep.subr.mxu0 0.0
    %615 = vmatpush1.msra.mxu0 0.0
    %616 = vmatprep.subr.mxu0 0.0
    %617 = vmatpush1.msra.mxu0 0.0
    %618 = vmatprep.mubr.f32.mxu0 0.0
    %619 = vmatmul.mubr.f32.gmra.mrb[0].mxu0 %v481
    %v620 = vpop.f32.mrb[0].mxu0
    %v621 = vadd.f32 %v550, %v620
    %v622 = vpop.f32.mrb[0].mxu0
    %v623 = vadd.f32 %v552, %v622
    %624 = vdwg.mxu0
    %625 = vmatprep.subr.mxu0 %v120
    %626 = vmatpush1.msra.mxu0 %v119
    %627 = vmatprep.subr.mxu0 %v128
    %628 = vmatpush1.msra.mxu0 %v127
    %629 = vmatprep.subr.mxu0 %v136
    %630 = vmatpush1.msra.mxu0 %v135
    %631 = vmatprep.subr.mxu0 %v144
    %632 = vmatpush1.msra.mxu0 %v143
    %633 = vmatprep.subr.mxu0 %v152
    %634 = vmatpush1.msra.mxu0 %v151
    %635 = vmatprep.subr.mxu0 %v160
    %636 = vmatpush1.msra.mxu0 %v159
    %637 = vmatprep.subr.mxu0 %v168
    %638 = vmatpush1.msra.mxu0 %v167
    %639 = vmatprep.subr.mxu0 %v176
    %640 = vmatpush1.msra.mxu0 %v175
    %641 = vmatprep.subr.mxu0 %v184
    %642 = vmatpush1.msra.mxu0 %v183
    %643 = vmatprep.subr.mxu0 %v192
    %644 = vmatpush1.msra.mxu0 %v191
    %645 = vmatprep.subr.mxu0 %v200
    %646 = vmatpush1.msra.mxu0 %v199
    %647 = vmatprep.subr.mxu0 %v208
    %648 = vmatpush1.msra.mxu0 %v207
    %649 = vmatprep.subr.mxu0 %v216
    %650 = vmatpush1.msra.mxu0 %v215
    %651 = vmatprep.subr.mxu0 %v224
    %652 = vmatpush1.msra.mxu0 %v223
    %653 = vmatprep.subr.mxu0 %v232
    %654 = vmatpush1.msra.mxu0 %v231
    %655 = vmatprep.subr.mxu0 %v240
    %656 = vmatpush1.msra.mxu0 %v239
    %657 = vmatprep.subr.mxu0 %v248
    %658 = vmatpush1.msra.mxu0 %v247
    %659 = vmatprep.subr.mxu0 %v256
    %660 = vmatpush1.msra.mxu0 %v255
    %661 = vmatprep.subr.mxu0 %v264
    %662 = vmatpush1.msra.mxu0 %v263
    %663 = vmatprep.subr.mxu0 %v272
    %664 = vmatpush1.msra.mxu0 %v271
    %665 = vmatprep.subr.mxu0 %v280
    %666 = vmatpush1.msra.mxu0 %v279
    %667 = vmatprep.subr.mxu0 %v288
    %668 = vmatpush1.msra.mxu0 %v287
    %669 = vmatprep.subr.mxu0 %v296
    %670 = vmatpush1.msra.mxu0 %v295
    %671 = vmatprep.subr.mxu0 %v304
    %672 = vmatpush1.msra.mxu0 %v303
    %673 = vmatprep.subr.mxu0 %v312
    %674 = vmatpush1.msra.mxu0 %v311
    %675 = vmatprep.subr.mxu0 %v320
    %676 = vmatpush1.msra.mxu0 %v319
    %677 = vmatprep.subr.mxu0 %v328
    %678 = vmatpush1.msra.mxu0 %v327
    %679 = vmatprep.subr.mxu0 %v336
    %680 = vmatpush1.msra.mxu0 %v335
    %681 = vmatprep.subr.mxu0 %v344
    %682 = vmatpush1.msra.mxu0 %v343
    %683 = vmatprep.subr.mxu0 %v352
    %684 = vmatpush1.msra.mxu0 %v351
    %685 = vmatprep.subr.mxu0 %v360
    %686 = vmatpush1.msra.mxu0 %v359
    %687 = vmatprep.subr.mxu0 %v368
    %688 = vmatpush1.msra.mxu0 %v367
    %689 = vmatprep.mubr.f32.mxu0 %v115
    %690 = vmatmul.mubr.f32.gmra.mrb[0].mxu0 %v114
    %v691 = vpop.f32.mrb[0].mxu0
    %v692 = vadd.f32 %v450, %v691
    %v693 = vpop.f32.mrb[0].mxu0
    %v694 = vadd.f32 %v454, %v693
    %695 = vdwg.mxu0
    %696 = vmatprep.subr.mxu0 %v376
    %697 = vmatpush1.msra.mxu0 %v375
    %698 = vmatprep.subr.mxu0 %v384
    %699 = vmatpush1.msra.mxu0 %v383
    %700 = vmatprep.subr.mxu0 %v392
    %701 = vmatpush1.msra.mxu0 %v391
    %702 = vmatprep.subr.mxu0 %v400
    %703 = vmatpush1.msra.mxu0 %v399
    %704 = vmatprep.subr.mxu0 %v408
    %705 = vmatpush1.msra.mxu0 %v407
    %706 = vmatprep.subr.mxu0 %v416
    %707 = vmatpush1.msra.mxu0 %v415
    %708 = vmatprep.subr.mxu0 %v424
    %709 = vmatpush1.msra.mxu0 %v423
    %710 = vmatprep.subr.mxu0 %v432
    %711 = vmatpush1.msra.mxu0 %v431
    %712 = vmatprep.subr.mxu0 0.0
    %713 = vmatpush1.msra.mxu0 0.0
    %714 = vmatprep.subr.mxu0 0.0
    %715 = vmatpush1.msra.mxu0 0.0
    %716 = vmatprep.subr.mxu0 0.0
    %717 = vmatpush1.msra.mxu0 0.0
    %718 = vmatprep.subr.mxu0 0.0
    %719 = vmatpush1.msra.mxu0 0.0
    %720 = vmatprep.subr.mxu0 0.0
    %721 = vmatpush1.msra.mxu0 0.0
    %722 = vmatprep.subr.mxu0 0.0
    %723 = vmatpush1.msra.mxu0 0.0
    %724 = vmatprep.subr.mxu0 0.0
    %725 = vmatpush1.msra.mxu0 0.0
    %726 = vmatprep.subr.mxu0 0.0
    %727 = vmatpush1.msra.mxu0 0.0
    %728 = vmatprep.subr.mxu0 0.0
    %729 = vmatpush1.msra.mxu0 0.0
    %730 = vmatprep.subr.mxu0 0.0
    %731 = vmatpush1.msra.mxu0 0.0
    %732 = vmatprep.subr.mxu0 0.0
    %733 = vmatpush1.msra.mxu0 0.0
    %734 = vmatprep.subr.mxu0 0.0
    %735 = vmatpush1.msra.mxu0 0.0
    %736 = vmatprep.subr.mxu0 0.0
    %737 = vmatpush1.msra.mxu0 0.0
    %738 = vmatprep.subr.mxu0 0.0
    %739 = vmatpush1.msra.mxu0 0.0
    %740 = vmatprep.subr.mxu0 0.0
    %741 = vmatpush1.msra.mxu0 0.0
    %742 = vmatprep.subr.mxu0 0.0
    %743 = vmatpush1.msra.mxu0 0.0
    %744 = vmatprep.subr.mxu0 0.0
    %745 = vmatpush1.msra.mxu0 0.0
    %746 = vmatprep.subr.mxu0 0.0
    %747 = vmatpush1.msra.mxu0 0.0
    %748 = vmatprep.subr.mxu0 0.0
    %749 = vmatpush1.msra.mxu0 0.0
    %750 = vmatprep.subr.mxu0 0.0
    %751 = vmatpush1.msra.mxu0 0.0
    %752 = vmatprep.subr.mxu0 0.0
    %753 = vmatpush1.msra.mxu0 0.0
    %754 = vmatprep.subr.mxu0 0.0
    %755 = vmatpush1.msra.mxu0 0.0
    %756 = vmatprep.subr.mxu0 0.0
    %757 = vmatpush1.msra.mxu0 0.0
    %758 = vmatprep.subr.mxu0 0.0
    %759 = vmatpush1.msra.mxu0 0.0
    %760 = vmatprep.mubr.f32.mxu0 0.0
    %761 = vmatmul.mubr.f32.gmra.mrb[0].mxu0 %v481
    %v762 = vpop.f32.mrb[0].mxu0
    %v763 = vadd.f32 %v692, %v762
    %v764 = vpop.f32.mrb[0].mxu0
    %v765 = vadd.f32 %v694, %v764
    %766 = vdwg.mxu0
    %767 = vmatprep.subr.mxu0 %v122
    %768 = vmatpush1.msra.mxu0 %v121
    %769 = vmatprep.subr.mxu0 %v130
    %770 = vmatpush1.msra.mxu0 %v129
    %771 = vmatprep.subr.mxu0 %v138
    %772 = vmatpush1.msra.mxu0 %v137
    %773 = vmatprep.subr.mxu0 %v146
    %774 = vmatpush1.msra.mxu0 %v145
    %775 = vmatprep.subr.mxu0 %v154
    %776 = vmatpush1.msra.mxu0 %v153
    %777 = vmatprep.subr.mxu0 %v162
    %778 = vmatpush1.msra.mxu0 %v161
    %779 = vmatprep.subr.mxu0 %v170
    %780 = vmatpush1.msra.mxu0 %v169
    %781 = vmatprep.subr.mxu0 %v178
    %782 = vmatpush1.msra.mxu0 %v177
    %783 = vmatprep.subr.mxu0 %v186
    %784 = vmatpush1.msra.mxu0 %v185
    %785 = vmatprep.subr.mxu0 %v194
    %786 = vmatpush1.msra.mxu0 %v193
    %787 = vmatprep.subr.mxu0 %v202
    %788 = vmatpush1.msra.mxu0 %v201
    %789 = vmatprep.subr.mxu0 %v210
    %790 = vmatpush1.msra.mxu0 %v209
    %791 = vmatprep.subr.mxu0 %v218
    %792 = vmatpush1.msra.mxu0 %v217
    %793 = vmatprep.subr.mxu0 %v226
    %794 = vmatpush1.msra.mxu0 %v225
    %795 = vmatprep.subr.mxu0 %v234
    %796 = vmatpush1.msra.mxu0 %v233
    %797 = vmatprep.subr.mxu0 %v242
    %798 = vmatpush1.msra.mxu0 %v241
    %799 = vmatprep.subr.mxu0 %v250
    %800 = vmatpush1.msra.mxu0 %v249
    %801 = vmatprep.subr.mxu0 %v258
    %802 = vmatpush1.msra.mxu0 %v257
    %803 = vmatprep.subr.mxu0 %v266
    %804 = vmatpush1.msra.mxu0 %v265
    %805 = vmatprep.subr.mxu0 %v274
    %806 = vmatpush1.msra.mxu0 %v273
    %807 = vmatprep.subr.mxu0 %v282
    %808 = vmatpush1.msra.mxu0 %v281
    %809 = vmatprep.subr.mxu0 %v290
    %810 = vmatpush1.msra.mxu0 %v289
    %811 = vmatprep.subr.mxu0 %v298
    %812 = vmatpush1.msra.mxu0 %v297
    %813 = vmatprep.subr.mxu0 %v306
    %814 = vmatpush1.msra.mxu0 %v305
    %815 = vmatprep.subr.mxu0 %v314
    %816 = vmatpush1.msra.mxu0 %v313
    %817 = vmatprep.subr.mxu0 %v322
    %818 = vmatpush1.msra.mxu0 %v321
    %819 = vmatprep.subr.mxu0 %v330
    %820 = vmatpush1.msra.mxu0 %v329
    %821 = vmatprep.subr.mxu0 %v338
    %822 = vmatpush1.msra.mxu0 %v337
    %823 = vmatprep.subr.mxu0 %v346
    %824 = vmatpush1.msra.mxu0 %v345
    %825 = vmatprep.subr.mxu0 %v354
    %826 = vmatpush1.msra.mxu0 %v353
    %827 = vmatprep.subr.mxu0 %v362
    %828 = vmatpush1.msra.mxu0 %v361
    %829 = vmatprep.subr.mxu0 %v370
    %830 = vmatpush1.msra.mxu0 %v369
    %831 = vmatprep.mubr.f32.mxu0 %v115
    %832 = vmatmul.mubr.f32.gmra.mrb[0].mxu0 %v114
    %v833 = vpop.f32.mrb[0].mxu0
    %v834 = vadd.f32 %v458, %v833
    %v835 = vpop.f32.mrb[0].mxu0
    %v836 = vadd.f32 %v462, %v835
    %837 = vdwg.mxu0
    %838 = vmatprep.subr.mxu0 %v378
    %839 = vmatpush1.msra.mxu0 %v377
    %840 = vmatprep.subr.mxu0 %v386
    %841 = vmatpush1.msra.mxu0 %v385
    %842 = vmatprep.subr.mxu0 %v394
    %843 = vmatpush1.msra.mxu0 %v393
    %844 = vmatprep.subr.mxu0 %v402
    %845 = vmatpush1.msra.mxu0 %v401
    %846 = vmatprep.subr.mxu0 %v410
    %847 = vmatpush1.msra.mxu0 %v409
    %848 = vmatprep.subr.mxu0 %v418
    %849 = vmatpush1.msra.mxu0 %v417
    %850 = vmatprep.subr.mxu0 %v426
    %851 = vmatpush1.msra.mxu0 %v425
    %852 = vmatprep.subr.mxu0 %v434
    %853 = vmatpush1.msra.mxu0 %v433
    %854 = vmatprep.subr.mxu0 0.0
    %855 = vmatpush1.msra.mxu0 0.0
    %856 = vmatprep.subr.mxu0 0.0
    %857 = vmatpush1.msra.mxu0 0.0
    %858 = vmatprep.subr.mxu0 0.0
    %859 = vmatpush1.msra.mxu0 0.0
    %860 = vmatprep.subr.mxu0 0.0
    %861 = vmatpush1.msra.mxu0 0.0
    %862 = vmatprep.subr.mxu0 0.0
    %863 = vmatpush1.msra.mxu0 0.0
    %864 = vmatprep.subr.mxu0 0.0
    %865 = vmatpush1.msra.mxu0 0.0
    %866 = vmatprep.subr.mxu0 0.0
    %867 = vmatpush1.msra.mxu0 0.0
    %868 = vmatprep.subr.mxu0 0.0
    %869 = vmatpush1.msra.mxu0 0.0
    %870 = vmatprep.subr.mxu0 0.0
    %871 = vmatpush1.msra.mxu0 0.0
    %872 = vmatprep.subr.mxu0 0.0
    %873 = vmatpush1.msra.mxu0 0.0
    %874 = vmatprep.subr.mxu0 0.0
    %875 = vmatpush1.msra.mxu0 0.0
    %876 = vmatprep.subr.mxu0 0.0
    %877 = vmatpush1.msra.mxu0 0.0
    %878 = vmatprep.subr.mxu0 0.0
    %879 = vmatpush1.msra.mxu0 0.0
    %880 = vmatprep.subr.mxu0 0.0
    %881 = vmatpush1.msra.mxu0 0.0
    %882 = vmatprep.subr.mxu0 0.0
    %883 = vmatpush1.msra.mxu0 0.0
    %884 = vmatprep.subr.mxu0 0.0
    %885 = vmatpush1.msra.mxu0 0.0
    %886 = vmatprep.subr.mxu0 0.0
    %887 = vmatpush1.msra.mxu0 0.0
    %888 = vmatprep.subr.mxu0 0.0
    %889 = vmatpush1.msra.mxu0 0.0
    %890 = vmatprep.subr.mxu0 0.0
    %891 = vmatpush1.msra.mxu0 0.0
    %892 = vmatprep.subr.mxu0 0.0
    %893 = vmatpush1.msra.mxu0 0.0
    %894 = vmatprep.subr.mxu0 0.0
    %895 = vmatpush1.msra.mxu0 0.0
    %896 = vmatprep.subr.mxu0 0.0
    %897 = vmatpush1.msra.mxu0 0.0
    %898 = vmatprep.subr.mxu0 0.0
    %899 = vmatpush1.msra.mxu0 0.0
    %900 = vmatprep.subr.mxu0 0.0
    %901 = vmatpush1.msra.mxu0 0.0
    %902 = vmatprep.mubr.f32.mxu0 0.0
    %903 = vmatmul.mubr.f32.gmra.mrb[0].mxu0 %v481
    %v904 = vpop.f32.mrb[0].mxu0
    %v905 = vadd.f32 %v834, %v904
    %v906 = vpop.f32.mrb[0].mxu0
    %v907 = vadd.f32 %v836, %v906
    %908 = vdwg.mxu0
    %909 = vmatprep.subr.mxu0 %v124
    %910 = vmatpush1.msra.mxu0 %v123
    %911 = vmatprep.subr.mxu0 %v132
    %912 = vmatpush1.msra.mxu0 %v131
    %913 = vmatprep.subr.mxu0 %v140
    %914 = vmatpush1.msra.mxu0 %v139
    %915 = vmatprep.subr.mxu0 %v148
    %916 = vmatpush1.msra.mxu0 %v147
    %917 = vmatprep.subr.mxu0 %v156
    %918 = vmatpush1.msra.mxu0 %v155
    %919 = vmatprep.subr.mxu0 %v164
    %920 = vmatpush1.msra.mxu0 %v163
    %921 = vmatprep.subr.mxu0 %v172
    %922 = vmatpush1.msra.mxu0 %v171
    %923 = vmatprep.subr.mxu0 %v180
    %924 = vmatpush1.msra.mxu0 %v179
    %925 = vmatprep.subr.mxu0 %v188
    %926 = vmatpush1.msra.mxu0 %v187
    %927 = vmatprep.subr.mxu0 %v196
    %928 = vmatpush1.msra.mxu0 %v195
    %929 = vmatprep.subr.mxu0 %v204
    %930 = vmatpush1.msra.mxu0 %v203
    %931 = vmatprep.subr.mxu0 %v212
    %932 = vmatpush1.msra.mxu0 %v211
    %933 = vmatprep.subr.mxu0 %v220
    %934 = vmatpush1.msra.mxu0 %v219
    %935 = vmatprep.subr.mxu0 %v228
    %936 = vmatpush1.msra.mxu0 %v227
    %937 = vmatprep.subr.mxu0 %v236
    %938 = vmatpush1.msra.mxu0 %v235
    %939 = vmatprep.subr.mxu0 %v244
    %940 = vmatpush1.msra.mxu0 %v243
    %941 = vmatprep.subr.mxu0 %v252
    %942 = vmatpush1.msra.mxu0 %v251
    %943 = vmatprep.subr.mxu0 %v260
    %944 = vmatpush1.msra.mxu0 %v259
    %945 = vmatprep.subr.mxu0 %v268
    %946 = vmatpush1.msra.mxu0 %v267
    %947 = vmatprep.subr.mxu0 %v276
    %948 = vmatpush1.msra.mxu0 %v275
    %949 = vmatprep.subr.mxu0 %v284
    %950 = vmatpush1.msra.mxu0 %v283
    %951 = vmatprep.subr.mxu0 %v292
    %952 = vmatpush1.msra.mxu0 %v291
    %953 = vmatprep.subr.mxu0 %v300
    %954 = vmatpush1.msra.mxu0 %v299
    %955 = vmatprep.subr.mxu0 %v308
    %956 = vmatpush1.msra.mxu0 %v307
    %957 = vmatprep.subr.mxu0 %v316
    %958 = vmatpush1.msra.mxu0 %v315
    %959 = vmatprep.subr.mxu0 %v324
    %960 = vmatpush1.msra.mxu0 %v323
    %961 = vmatprep.subr.mxu0 %v332
    %962 = vmatpush1.msra.mxu0 %v331
    %963 = vmatprep.subr.mxu0 %v340
    %964 = vmatpush1.msra.mxu0 %v339
    %965 = vmatprep.subr.mxu0 %v348
    %966 = vmatpush1.msra.mxu0 %v347
    %967 = vmatprep.subr.mxu0 %v356
    %968 = vmatpush1.msra.mxu0 %v355
    %969 = vmatprep.subr.mxu0 %v364
    %970 = vmatpush1.msra.mxu0 %v363
    %971 = vmatprep.subr.mxu0 %v372
    %972 = vmatpush1.msra.mxu0 %v371
    %973 = vmatprep.mubr.f32.mxu0 %v115
    %974 = vmatmul.mubr.f32.gmra.mrb[0].mxu0 %v114
    %v975 = vpop.f32.mrb[0].mxu0
    %v976 = vadd.f32 %v466, %v975
    %v977 = vpop.f32.mrb[0].mxu0
    %v978 = vadd.f32 %v470, %v977
    %979 = vdwg.mxu0
    %980 = vmatprep.subr.mxu0 %v380
    %981 = vmatpush1.msra.mxu0 %v379
    %982 = vmatprep.subr.mxu0 %v388
    %983 = vmatpush1.msra.mxu0 %v387
    %984 = vmatprep.subr.mxu0 %v396
    %985 = vmatpush1.msra.mxu0 %v395
    %986 = vmatprep.subr.mxu0 %v404
    %987 = vmatpush1.msra.mxu0 %v403
    %988 = vmatprep.subr.mxu0 %v412
    %989 = vmatpush1.msra.mxu0 %v411
    %990 = vmatprep.subr.mxu0 %v420
    %991 = vmatpush1.msra.mxu0 %v419
    %992 = vmatprep.subr.mxu0 %v428
    %993 = vmatpush1.msra.mxu0 %v427
    %994 = vmatprep.subr.mxu0 %v436
    %995 = vmatpush1.msra.mxu0 %v435
    %996 = vmatprep.subr.mxu0 0.0
    %997 = vmatpush1.msra.mxu0 0.0
    %998 = vmatprep.subr.mxu0 0.0
    %999 = vmatpush1.msra.mxu0 0.0
    %1000 = vmatprep.subr.mxu0 0.0
    %1001 = vmatpush1.msra.mxu0 0.0
    %1002 = vmatprep.subr.mxu0 0.0
    %1003 = vmatpush1.msra.mxu0 0.0
    %1004 = vmatprep.subr.mxu0 0.0
    %1005 = vmatpush1.msra.mxu0 0.0
    %1006 = vmatprep.subr.mxu0 0.0
    %1007 = vmatpush1.msra.mxu0 0.0
    %1008 = vmatprep.subr.mxu0 0.0
    %1009 = vmatpush1.msra.mxu0 0.0
    %1010 = vmatprep.subr.mxu0 0.0
    %1011 = vmatpush1.msra.mxu0 0.0
    %1012 = vmatprep.subr.mxu0 0.0
    %1013 = vmatpush1.msra.mxu0 0.0
    %1014 = vmatprep.subr.mxu0 0.0
    %1015 = vmatpush1.msra.mxu0 0.0
    %1016 = vmatprep.subr.mxu0 0.0
    %1017 = vmatpush1.msra.mxu0 0.0
    %1018 = vmatprep.subr.mxu0 0.0
    %1019 = vmatpush1.msra.mxu0 0.0
    %1020 = vmatprep.subr.mxu0 0.0
    %1021 = vmatpush1.msra.mxu0 0.0
    %1022 = vmatprep.subr.mxu0 0.0
    %1023 = vmatpush1.msra.mxu0 0.0
    %1024 = vmatprep.subr.mxu0 0.0
    %1025 = vmatpush1.msra.mxu0 0.0
    %1026 = vmatprep.subr.mxu0 0.0
    %1027 = vmatpush1.msra.mxu0 0.0
    %1028 = vmatprep.subr.mxu0 0.0
    %1029 = vmatpush1.msra.mxu0 0.0
    %1030 = vmatprep.subr.mxu0 0.0
    %1031 = vmatpush1.msra.mxu0 0.0
    %1032 = vmatprep.subr.mxu0 0.0
    %1033 = vmatpush1.msra.mxu0 0.0
    %1034 = vmatprep.subr.mxu0 0.0
    %1035 = vmatpush1.msra.mxu0 0.0
    %1036 = vmatprep.subr.mxu0 0.0
    %1037 = vmatpush1.msra.mxu0 0.0
    %1038 = vmatprep.subr.mxu0 0.0
    %1039 = vmatpush1.msra.mxu0 0.0
    %1040 = vmatprep.subr.mxu0 0.0
    %1041 = vmatpush1.msra.mxu0 0.0
    %1042 = vmatprep.subr.mxu0 0.0
    %1043 = vmatpush1.msra.mxu0 0.0
    %1044 = vmatprep.mubr.f32.mxu0 0.0
    %1045 = vmatmul.mubr.f32.gmra.mrb[0].mxu0 %v481
    %v1046 = vpop.f32.mrb[0].mxu0
    %v1047 = vadd.f32 %v976, %v1046
    %v1048 = vpop.f32.mrb[0].mxu0
    %v1049 = vadd.f32 %v978, %v1048
    %1050 = vdwg.mxu0
    %vm1051 = vcmp.gt.f32.partialorder %v621, 0.0
    %vm1052 = vcmp.gt.f32.partialorder %v623, 0.0
    %vm1053 = vcmp.gt.f32.partialorder %v763, 0.0
    %vm1054 = vcmp.gt.f32.partialorder %v765, 0.0
    %vm1055 = vcmp.gt.f32.partialorder %v905, 0.0
    %vm1056 = vcmp.gt.f32.partialorder %v907, 0.0
    %vm1057 = vcmp.gt.f32.partialorder %v1047, 0.0
    %vm1058 = vcmp.gt.f32.partialorder %v1049, 0.0
    %v1059 = vmul.f32 %v621, 0.01
    %v1060 = vmul.f32 %v623, 0.01
    %v1061 = vmul.f32 %v763, 0.01
    %v1062 = vmul.f32 %v765, 0.01
    %v1063 = vmul.f32 %v905, 0.01
    %v1064 = vmul.f32 %v907, 0.01
    %v1065 = vmul.f32 %v1047, 0.01
    %v1066 = vmul.f32 %v1049, 0.01
    %v1067 = vsel %vm1051, %v621, %v1059
    %v1068 = vsel %vm1052, %v623, %v1060
    %v1069 = vsel %vm1053, %v763, %v1061
    %v1070 = vsel %vm1054, %v765, %v1062
    %v1071 = vsel %vm1055, %v905, %v1063
    %v1072 = vsel %vm1056, %v907, %v1064
    %v1073 = vsel %vm1057, %v1047, %v1065
    %v1074 = vsel %vm1058, %v1049, %v1066
    %v1075 = vld [vmem:[#allocation8] sm:$0xff]
    %v1076 = vld [vmem:[#allocation8 + $0x8] sm:$0xff]
    %v1077 = vld [vmem:[#allocation8 + $0x10] sm:$0xff]
    %v1078 = vld [vmem:[#allocation8 + $0x18] sm:$0xff]
    %v1079 = vld [vmem:[#allocation8 + $0x20] sm:$0xff]
    %v1080 = vld [vmem:[#allocation8 + $0x28] sm:$0xff]
    %v1081 = vld [vmem:[#allocation8 + $0x30] sm:$0xff]
    %v1082 = vld [vmem:[#allocation8 + $0x38] sm:$0xff]
    %v1083 = vld [vmem:[#allocation8 + $0x40] sm:$0xff]
    %v1084 = vld [vmem:[#allocation8 + $0x48] sm:$0xff]
    %v1085 = vld [vmem:[#allocation8 + $0x50] sm:$0xff]
    %v1086 = vld [vmem:[#allocation8 + $0x58] sm:$0xff]
    %v1087 = vld [vmem:[#allocation8 + $0x60] sm:$0xff]
    %v1088 = vld [vmem:[#allocation8 + $0x68] sm:$0xff]
    %v1089 = vld [vmem:[#allocation8 + $0x70] sm:$0xff]
    %v1090 = vld [vmem:[#allocation8 + $0x78] sm:$0xff]
    %v1091 = vld [vmem:[#allocation8 + $0x80] sm:$0xff]
    %v1092 = vld [vmem:[#allocation8 + $0x88] sm:$0xff]
    %v1093 = vld [vmem:[#allocation8 + $0x90] sm:$0xff]
    %v1094 = vld [vmem:[#allocation8 + $0x98] sm:$0xff]
    %v1095 = vld [vmem:[#allocation8 + $0xa0] sm:$0xff]
    %v1096 = vld [vmem:[#allocation8 + $0xa8] sm:$0xff]
    %v1097 = vld [vmem:[#allocation8 + $0xb0] sm:$0xff]
    %v1098 = vld [vmem:[#allocation8 + $0xb8] sm:$0xff]
    %v1099 = vld [vmem:[#allocation8 + $0xc0] sm:$0xff]
    %v1100 = vld [vmem:[#allocation8 + $0xc8] sm:$0xff]
    %v1101 = vld [vmem:[#allocation8 + $0xd0] sm:$0xff]
    %v1102 = vld [vmem:[#allocation8 + $0xd8] sm:$0xff]
    %v1103 = vld [vmem:[#allocation8 + $0xe0] sm:$0xff]
    %v1104 = vld [vmem:[#allocation8 + $0xe8] sm:$0xff]
    %v1105 = vld [vmem:[#allocation8 + $0xf0] sm:$0xff]
    %v1106 = vld [vmem:[#allocation8 + $0xf8] sm:$0xff]
    %v1107 = vld [vmem:[#allocation8 + $0x100] sm:$0xff]
    %v1108 = vld [vmem:[#allocation8 + $0x108] sm:$0xff]
    %v1109 = vld [vmem:[#allocation8 + $0x110] sm:$0xff]
    %v1110 = vld [vmem:[#allocation8 + $0x118] sm:$0xff]
    %v1111 = vld [vmem:[#allocation8 + $0x120] sm:$0xff]
    %v1112 = vld [vmem:[#allocation8 + $0x128] sm:$0xff]
    %v1113 = vld [vmem:[#allocation8 + $0x130] sm:$0xff]
    %v1114 = vld [vmem:[#allocation8 + $0x138] sm:$0xff]
    %v1115 = vld [vmem:[#allocation8 + $0x140] sm:$0xff]
    %v1116 = vld [vmem:[#allocation8 + $0x148] sm:$0xff]
    %v1117 = vld [vmem:[#allocation8 + $0x150] sm:$0xff]
    %v1118 = vld [vmem:[#allocation8 + $0x158] sm:$0xff]
    %v1119 = vld [vmem:[#allocation8 + $0x160] sm:$0xff]
    %v1120 = vld [vmem:[#allocation8 + $0x168] sm:$0xff]
    %v1121 = vld [vmem:[#allocation8 + $0x170] sm:$0xff]
    %v1122 = vld [vmem:[#allocation8 + $0x178] sm:$0xff]
    %v1123 = vld [vmem:[#allocation8 + $0x180] sm:$0xff]
    %v1124 = vld [vmem:[#allocation8 + $0x188] sm:$0xff]
    %v1125 = vld [vmem:[#allocation8 + $0x190] sm:$0xff]
    %v1126 = vld [vmem:[#allocation8 + $0x198] sm:$0xff]
    %v1127 = vld [vmem:[#allocation8 + $0x1a0] sm:$0xff]
    %v1128 = vld [vmem:[#allocation8 + $0x1a8] sm:$0xff]
    %v1129 = vld [vmem:[#allocation8 + $0x1b0] sm:$0xff]
    %v1130 = vld [vmem:[#allocation8 + $0x1b8] sm:$0xff]
    %v1131 = vld [vmem:[#allocation8 + $0x1c0] sm:$0xff]
    %v1132 = vld [vmem:[#allocation8 + $0x1c8] sm:$0xff]
    %v1133 = vld [vmem:[#allocation8 + $0x1d0] sm:$0xff]
    %v1134 = vld [vmem:[#allocation8 + $0x1d8] sm:$0xff]
    %v1135 = vld [vmem:[#allocation8 + $0x1e0] sm:$0xff]
    %v1136 = vld [vmem:[#allocation8 + $0x1e8] sm:$0xff]
    %v1137 = vld [vmem:[#allocation8 + $0x1f0] sm:$0xff]
    %v1138 = vld [vmem:[#allocation8 + $0x1f8] sm:$0xff]
    %v1139 = vld [vmem:[#allocation8 + $0x200] sm:$0xff]
    %v1140 = vld [vmem:[#allocation8 + $0x208] sm:$0xff]
    %v1141 = vld [vmem:[#allocation8 + $0x210] sm:$0xff]
    %v1142 = vld [vmem:[#allocation8 + $0x218] sm:$0xff]
    %v1143 = vld [vmem:[#allocation8 + $0x220] sm:$0xff]
    %v1144 = vld [vmem:[#allocation8 + $0x228] sm:$0xff]
    %v1145 = vld [vmem:[#allocation8 + $0x230] sm:$0xff]
    %v1146 = vld [vmem:[#allocation8 + $0x238] sm:$0xff]
    %v1147 = vld [vmem:[#allocation8 + $0x240] sm:$0xff]
    %v1148 = vld [vmem:[#allocation8 + $0x248] sm:$0xff]
    %v1149 = vld [vmem:[#allocation8 + $0x250] sm:$0xff]
    %v1150 = vld [vmem:[#allocation8 + $0x258] sm:$0xff]
    %v1151 = vld [vmem:[#allocation8 + $0x260] sm:$0xff]
    %v1152 = vld [vmem:[#allocation8 + $0x268] sm:$0xff]
    %v1153 = vld [vmem:[#allocation8 + $0x270] sm:$0xff]
    %v1154 = vld [vmem:[#allocation8 + $0x278] sm:$0xff]
    %v1155 = vld [vmem:[#allocation8 + $0x280] sm:$0xff]
    %v1156 = vld [vmem:[#allocation8 + $0x288] sm:$0xff]
    %v1157 = vld [vmem:[#allocation8 + $0x290] sm:$0xff]
    %v1158 = vld [vmem:[#allocation8 + $0x298] sm:$0xff]
    %v1159 = vld [vmem:[#allocation8 + $0x2a0] sm:$0xff]
    %v1160 = vld [vmem:[#allocation8 + $0x2a8] sm:$0xff]
    %v1161 = vld [vmem:[#allocation8 + $0x2b0] sm:$0xff]
    %v1162 = vld [vmem:[#allocation8 + $0x2b8] sm:$0xff]
    %v1163 = vld [vmem:[#allocation8 + $0x2c0] sm:$0xff]
    %v1164 = vld [vmem:[#allocation8 + $0x2c8] sm:$0xff]
    %v1165 = vld [vmem:[#allocation8 + $0x2d0] sm:$0xff]
    %v1166 = vld [vmem:[#allocation8 + $0x2d8] sm:$0xff]
    %v1167 = vld [vmem:[#allocation8 + $0x2e0] sm:$0xff]
    %v1168 = vld [vmem:[#allocation8 + $0x2e8] sm:$0xff]
    %v1169 = vld [vmem:[#allocation8 + $0x2f0] sm:$0xff]
    %v1170 = vld [vmem:[#allocation8 + $0x2f8] sm:$0xff]
    %v1171 = vld [vmem:[#allocation8 + $0x300] sm:$0xff]
    %v1172 = vld [vmem:[#allocation8 + $0x308] sm:$0xff]
    %v1173 = vld [vmem:[#allocation8 + $0x310] sm:$0xff]
    %v1174 = vld [vmem:[#allocation8 + $0x318] sm:$0xff]
    %v1175 = vld [vmem:[#allocation8 + $0x320] sm:$0xff]
    %v1176 = vld [vmem:[#allocation8 + $0x328] sm:$0xff]
    %v1177 = vld [vmem:[#allocation8 + $0x330] sm:$0xff]
    %v1178 = vld [vmem:[#allocation8 + $0x338] sm:$0xff]
    %v1179 = vld [vmem:[#allocation8 + $0x340] sm:$0xff]
    %v1180 = vld [vmem:[#allocation8 + $0x348] sm:$0xff]
    %v1181 = vld [vmem:[#allocation8 + $0x350] sm:$0xff]
    %v1182 = vld [vmem:[#allocation8 + $0x358] sm:$0xff]
    %v1183 = vld [vmem:[#allocation8 + $0x360] sm:$0xff]
    %v1184 = vld [vmem:[#allocation8 + $0x368] sm:$0xff]
    %v1185 = vld [vmem:[#allocation8 + $0x370] sm:$0xff]
    %v1186 = vld [vmem:[#allocation8 + $0x378] sm:$0xff]
    %v1187 = vld [vmem:[#allocation8 + $0x380] sm:$0xff]
    %v1188 = vld [vmem:[#allocation8 + $0x388] sm:$0xff]
    %v1189 = vld [vmem:[#allocation8 + $0x390] sm:$0xff]
    %v1190 = vld [vmem:[#allocation8 + $0x398] sm:$0xff]
    %v1191 = vld [vmem:[#allocation8 + $0x3a0] sm:$0xff]
    %v1192 = vld [vmem:[#allocation8 + $0x3a8] sm:$0xff]
    %v1193 = vld [vmem:[#allocation8 + $0x3b0] sm:$0xff]
    %v1194 = vld [vmem:[#allocation8 + $0x3b8] sm:$0xff]
    %v1195 = vld [vmem:[#allocation8 + $0x3c0] sm:$0xff]
    %v1196 = vld [vmem:[#allocation8 + $0x3c8] sm:$0xff]
    %v1197 = vld [vmem:[#allocation8 + $0x3d0] sm:$0xff]
    %v1198 = vld [vmem:[#allocation8 + $0x3d8] sm:$0xff]
    %v1199 = vld [vmem:[#allocation8 + $0x3e0] sm:$0xff]
    %v1200 = vld [vmem:[#allocation8 + $0x3e8] sm:$0xff]
    %v1201 = vld [vmem:[#allocation8 + $0x3f0] sm:$0xff]
    %v1202 = vld [vmem:[#allocation8 + $0x3f8] sm:$0xff]
    %v1203 = vld [vmem:[#allocation10] sm:$0x1]
    %v1205 = vlaneseq
    %v1206 = vshrl.u32 %v1205, 7
    %v1207 = vsub.s32 0, %v1206
    %v1208 = vrot.slane %v1203, %v1207
    %1210 = vmatprep.subr.mxu0 0.0
    %1211 = vmatpush1.msra.mxu0 %v1075
    %1212 = vmatprep.subr.mxu0 0.0
    %1213 = vmatpush1.msra.mxu0 %v1076
    %1214 = vmatprep.subr.mxu0 0.0
    %1215 = vmatpush1.msra.mxu0 %v1077
    %1216 = vmatprep.subr.mxu0 0.0
    %1217 = vmatpush1.msra.mxu0 %v1078
    %1218 = vmatprep.subr.mxu0 0.0
    %1219 = vmatpush1.msra.mxu0 %v1079
    %1220 = vmatprep.subr.mxu0 0.0
    %1221 = vmatpush1.msra.mxu0 %v1080
    %1222 = vmatprep.subr.mxu0 0.0
    %1223 = vmatpush1.msra.mxu0 %v1081
    %1224 = vmatprep.subr.mxu0 0.0
    %1225 = vmatpush1.msra.mxu0 %v1082
    %1226 = vmatprep.subr.mxu0 0.0
    %1227 = vmatpush1.msra.mxu0 %v1083
    %1228 = vmatprep.subr.mxu0 0.0
    %1229 = vmatpush1.msra.mxu0 %v1084
    %1230 = vmatprep.subr.mxu0 0.0
    %1231 = vmatpush1.msra.mxu0 %v1085
    %1232 = vmatprep.subr.mxu0 0.0
    %1233 = vmatpush1.msra.mxu0 %v1086
    %1234 = vmatprep.subr.mxu0 0.0
    %1235 = vmatpush1.msra.mxu0 %v1087
    %1236 = vmatprep.subr.mxu0 0.0
    %1237 = vmatpush1.msra.mxu0 %v1088
    %1238 = vmatprep.subr.mxu0 0.0
    %1239 = vmatpush1.msra.mxu0 %v1089
    %1240 = vmatprep.subr.mxu0 0.0
    %1241 = vmatpush1.msra.mxu0 %v1090
    %1242 = vmatprep.subr.mxu0 0.0
    %1243 = vmatpush1.msra.mxu0 %v1091
    %1244 = vmatprep.subr.mxu0 0.0
    %1245 = vmatpush1.msra.mxu0 %v1092
    %1246 = vmatprep.subr.mxu0 0.0
    %1247 = vmatpush1.msra.mxu0 %v1093
    %1248 = vmatprep.subr.mxu0 0.0
    %1249 = vmatpush1.msra.mxu0 %v1094
    %1250 = vmatprep.subr.mxu0 0.0
    %1251 = vmatpush1.msra.mxu0 %v1095
    %1252 = vmatprep.subr.mxu0 0.0
    %1253 = vmatpush1.msra.mxu0 %v1096
    %1254 = vmatprep.subr.mxu0 0.0
    %1255 = vmatpush1.msra.mxu0 %v1097
    %1256 = vmatprep.subr.mxu0 0.0
    %1257 = vmatpush1.msra.mxu0 %v1098
    %1258 = vmatprep.subr.mxu0 0.0
    %1259 = vmatpush1.msra.mxu0 %v1099
    %1260 = vmatprep.subr.mxu0 0.0
    %1261 = vmatpush1.msra.mxu0 %v1100
    %1262 = vmatprep.subr.mxu0 0.0
    %1263 = vmatpush1.msra.mxu0 %v1101
    %1264 = vmatprep.subr.mxu0 0.0
    %1265 = vmatpush1.msra.mxu0 %v1102
    %1266 = vmatprep.subr.mxu0 0.0
    %1267 = vmatpush1.msra.mxu0 %v1103
    %1268 = vmatprep.subr.mxu0 0.0
    %1269 = vmatpush1.msra.mxu0 %v1104
    %1270 = vmatprep.subr.mxu0 0.0
    %1271 = vmatpush1.msra.mxu0 %v1105
    %1272 = vmatprep.subr.mxu0 0.0
    %1273 = vmatpush1.msra.mxu0 %v1106
    %1274 = vmatprep.mubr.f32.mxu0 %v1068
    %1275 = vmatmul.mubr.f32.gmra.mrb[0].mxu0 %v1067
    %v1276 = vpop.f32.mrb[0].mxu0
    %v1277 = vadd.f32 %v1208, %v1276
    %v1278 = vpop.f32.mrb[0].mxu0
    %1279 = vdwg.mxu0
    %1280 = vmatprep.subr.mxu0 0.0
    %1281 = vmatpush1.msra.mxu0 %v1107
    %1282 = vmatprep.subr.mxu0 0.0
    %1283 = vmatpush1.msra.mxu0 %v1108
    %1284 = vmatprep.subr.mxu0 0.0
    %1285 = vmatpush1.msra.mxu0 %v1109
    %1286 = vmatprep.subr.mxu0 0.0
    %1287 = vmatpush1.msra.mxu0 %v1110
    %1288 = vmatprep.subr.mxu0 0.0
    %1289 = vmatpush1.msra.mxu0 %v1111
    %1290 = vmatprep.subr.mxu0 0.0
    %1291 = vmatpush1.msra.mxu0 %v1112
    %1292 = vmatprep.subr.mxu0 0.0
    %1293 = vmatpush1.msra.mxu0 %v1113
    %1294 = vmatprep.subr.mxu0 0.0
    %1295 = vmatpush1.msra.mxu0 %v1114
    %1296 = vmatprep.subr.mxu0 0.0
    %1297 = vmatpush1.msra.mxu0 %v1115
    %1298 = vmatprep.subr.mxu0 0.0
    %1299 = vmatpush1.msra.mxu0 %v1116
    %1300 = vmatprep.subr.mxu0 0.0
    %1301 = vmatpush1.msra.mxu0 %v1117
    %1302 = vmatprep.subr.mxu0 0.0
    %1303 = vmatpush1.msra.mxu0 %v1118
    %1304 = vmatprep.subr.mxu0 0.0
    %1305 = vmatpush1.msra.mxu0 %v1119
    %1306 = vmatprep.subr.mxu0 0.0
    %1307 = vmatpush1.msra.mxu0 %v1120
    %1308 = vmatprep.subr.mxu0 0.0
    %1309 = vmatpush1.msra.mxu0 %v1121
    %1310 = vmatprep.subr.mxu0 0.0
    %1311 = vmatpush1.msra.mxu0 %v1122
    %1312 = vmatprep.subr.mxu0 0.0
    %1313 = vmatpush1.msra.mxu0 %v1123
    %1314 = vmatprep.subr.mxu0 0.0
    %1315 = vmatpush1.msra.mxu0 %v1124
    %1316 = vmatprep.subr.mxu0 0.0
    %1317 = vmatpush1.msra.mxu0 %v1125
    %1318 = vmatprep.subr.mxu0 0.0
    %1319 = vmatpush1.msra.mxu0 %v1126
    %1320 = vmatprep.subr.mxu0 0.0
    %1321 = vmatpush1.msra.mxu0 %v1127
    %1322 = vmatprep.subr.mxu0 0.0
    %1323 = vmatpush1.msra.mxu0 %v1128
    %1324 = vmatprep.subr.mxu0 0.0
    %1325 = vmatpush1.msra.mxu0 %v1129
    %1326 = vmatprep.subr.mxu0 0.0
    %1327 = vmatpush1.msra.mxu0 %v1130
    %1328 = vmatprep.subr.mxu0 0.0
    %1329 = vmatpush1.msra.mxu0 %v1131
    %1330 = vmatprep.subr.mxu0 0.0
    %1331 = vmatpush1.msra.mxu0 %v1132
    %1332 = vmatprep.subr.mxu0 0.0
    %1333 = vmatpush1.msra.mxu0 %v1133
    %1334 = vmatprep.subr.mxu0 0.0
    %1335 = vmatpush1.msra.mxu0 %v1134
    %1336 = vmatprep.subr.mxu0 0.0
    %1337 = vmatpush1.msra.mxu0 %v1135
    %1338 = vmatprep.subr.mxu0 0.0
    %1339 = vmatpush1.msra.mxu0 %v1136
    %1340 = vmatprep.subr.mxu0 0.0
    %1341 = vmatpush1.msra.mxu0 %v1137
    %1342 = vmatprep.subr.mxu0 0.0
    %1343 = vmatpush1.msra.mxu0 %v1138
    %1344 = vmatprep.mubr.f32.mxu0 %v1070
    %1345 = vmatmul.mubr.f32.gmra.mrb[0].mxu0 %v1069
    %v1346 = vpop.f32.mrb[0].mxu0
    %v1347 = vadd.f32 %v1277, %v1346
    %v1348 = vpop.f32.mrb[0].mxu0
    %1349 = vdwg.mxu0
    %1350 = vmatprep.subr.mxu0 0.0
    %1351 = vmatpush1.msra.mxu0 %v1139
    %1352 = vmatprep.subr.mxu0 0.0
    %1353 = vmatpush1.msra.mxu0 %v1140
    %1354 = vmatprep.subr.mxu0 0.0
    %1355 = vmatpush1.msra.mxu0 %v1141
    %1356 = vmatprep.subr.mxu0 0.0
    %1357 = vmatpush1.msra.mxu0 %v1142
    %1358 = vmatprep.subr.mxu0 0.0
    %1359 = vmatpush1.msra.mxu0 %v1143
    %1360 = vmatprep.subr.mxu0 0.0
    %1361 = vmatpush1.msra.mxu0 %v1144
    %1362 = vmatprep.subr.mxu0 0.0
    %1363 = vmatpush1.msra.mxu0 %v1145
    %1364 = vmatprep.subr.mxu0 0.0
    %1365 = vmatpush1.msra.mxu0 %v1146
    %1366 = vmatprep.subr.mxu0 0.0
    %1367 = vmatpush1.msra.mxu0 %v1147
    %1368 = vmatprep.subr.mxu0 0.0
    %1369 = vmatpush1.msra.mxu0 %v1148
    %1370 = vmatprep.subr.mxu0 0.0
    %1371 = vmatpush1.msra.mxu0 %v1149
    %1372 = vmatprep.subr.mxu0 0.0
    %1373 = vmatpush1.msra.mxu0 %v1150
    %1374 = vmatprep.subr.mxu0 0.0
    %1375 = vmatpush1.msra.mxu0 %v1151
    %1376 = vmatprep.subr.mxu0 0.0
    %1377 = vmatpush1.msra.mxu0 %v1152
    %1378 = vmatprep.subr.mxu0 0.0
    %1379 = vmatpush1.msra.mxu0 %v1153
    %1380 = vmatprep.subr.mxu0 0.0
    %1381 = vmatpush1.msra.mxu0 %v1154
    %1382 = vmatprep.subr.mxu0 0.0
    %1383 = vmatpush1.msra.mxu0 %v1155
    %1384 = vmatprep.subr.mxu0 0.0
    %1385 = vmatpush1.msra.mxu0 %v1156
    %1386 = vmatprep.subr.mxu0 0.0
    %1387 = vmatpush1.msra.mxu0 %v1157
    %1388 = vmatprep.subr.mxu0 0.0
    %1389 = vmatpush1.msra.mxu0 %v1158
    %1390 = vmatprep.subr.mxu0 0.0
    %1391 = vmatpush1.msra.mxu0 %v1159
    %1392 = vmatprep.subr.mxu0 0.0
    %1393 = vmatpush1.msra.mxu0 %v1160
    %1394 = vmatprep.subr.mxu0 0.0
    %1395 = vmatpush1.msra.mxu0 %v1161
    %1396 = vmatprep.subr.mxu0 0.0
    %1397 = vmatpush1.msra.mxu0 %v1162
    %1398 = vmatprep.subr.mxu0 0.0
    %1399 = vmatpush1.msra.mxu0 %v1163
    %1400 = vmatprep.subr.mxu0 0.0
    %1401 = vmatpush1.msra.mxu0 %v1164
    %1402 = vmatprep.subr.mxu0 0.0
    %1403 = vmatpush1.msra.mxu0 %v1165
    %1404 = vmatprep.subr.mxu0 0.0
    %1405 = vmatpush1.msra.mxu0 %v1166
    %1406 = vmatprep.subr.mxu0 0.0
    %1407 = vmatpush1.msra.mxu0 %v1167
    %1408 = vmatprep.subr.mxu0 0.0
    %1409 = vmatpush1.msra.mxu0 %v1168
    %1410 = vmatprep.subr.mxu0 0.0
    %1411 = vmatpush1.msra.mxu0 %v1169
    %1412 = vmatprep.subr.mxu0 0.0
    %1413 = vmatpush1.msra.mxu0 %v1170
    %1414 = vmatprep.mubr.f32.mxu0 %v1072
    %1415 = vmatmul.mubr.f32.gmra.mrb[0].mxu0 %v1071
    %v1416 = vpop.f32.mrb[0].mxu0
    %v1417 = vadd.f32 %v1347, %v1416
    %v1418 = vpop.f32.mrb[0].mxu0
    %1419 = vdwg.mxu0
    %1420 = vmatprep.subr.mxu0 0.0
    %1421 = vmatpush1.msra.mxu0 %v1171
    %1422 = vmatprep.subr.mxu0 0.0
    %1423 = vmatpush1.msra.mxu0 %v1172
    %1424 = vmatprep.subr.mxu0 0.0
    %1425 = vmatpush1.msra.mxu0 %v1173
    %1426 = vmatprep.subr.mxu0 0.0
    %1427 = vmatpush1.msra.mxu0 %v1174
    %1428 = vmatprep.subr.mxu0 0.0
    %1429 = vmatpush1.msra.mxu0 %v1175
    %1430 = vmatprep.subr.mxu0 0.0
    %1431 = vmatpush1.msra.mxu0 %v1176
    %1432 = vmatprep.subr.mxu0 0.0
    %1433 = vmatpush1.msra.mxu0 %v1177
    %1434 = vmatprep.subr.mxu0 0.0
    %1435 = vmatpush1.msra.mxu0 %v1178
    %1436 = vmatprep.subr.mxu0 0.0
    %1437 = vmatpush1.msra.mxu0 %v1179
    %1438 = vmatprep.subr.mxu0 0.0
    %1439 = vmatpush1.msra.mxu0 %v1180
    %1440 = vmatprep.subr.mxu0 0.0
    %1441 = vmatpush1.msra.mxu0 %v1181
    %1442 = vmatprep.subr.mxu0 0.0
    %1443 = vmatpush1.msra.mxu0 %v1182
    %1444 = vmatprep.subr.mxu0 0.0
    %1445 = vmatpush1.msra.mxu0 %v1183
    %1446 = vmatprep.subr.mxu0 0.0
    %1447 = vmatpush1.msra.mxu0 %v1184
    %1448 = vmatprep.subr.mxu0 0.0
    %1449 = vmatpush1.msra.mxu0 %v1185
    %1450 = vmatprep.subr.mxu0 0.0
    %1451 = vmatpush1.msra.mxu0 %v1186
    %1452 = vmatprep.subr.mxu0 0.0
    %1453 = vmatpush1.msra.mxu0 %v1187
    %1454 = vmatprep.subr.mxu0 0.0
    %1455 = vmatpush1.msra.mxu0 %v1188
    %1456 = vmatprep.subr.mxu0 0.0
    %1457 = vmatpush1.msra.mxu0 %v1189
    %1458 = vmatprep.subr.mxu0 0.0
    %1459 = vmatpush1.msra.mxu0 %v1190
    %1460 = vmatprep.subr.mxu0 0.0
    %1461 = vmatpush1.msra.mxu0 %v1191
    %1462 = vmatprep.subr.mxu0 0.0
    %1463 = vmatpush1.msra.mxu0 %v1192
    %1464 = vmatprep.subr.mxu0 0.0
    %1465 = vmatpush1.msra.mxu0 %v1193
    %1466 = vmatprep.subr.mxu0 0.0
    %1467 = vmatpush1.msra.mxu0 %v1194
    %1468 = vmatprep.subr.mxu0 0.0
    %1469 = vmatpush1.msra.mxu0 %v1195
    %1470 = vmatprep.subr.mxu0 0.0
    %1471 = vmatpush1.msra.mxu0 %v1196
    %1472 = vmatprep.subr.mxu0 0.0
    %1473 = vmatpush1.msra.mxu0 %v1197
    %1474 = vmatprep.subr.mxu0 0.0
    %1475 = vmatpush1.msra.mxu0 %v1198
    %1476 = vmatprep.subr.mxu0 0.0
    %1477 = vmatpush1.msra.mxu0 %v1199
    %1478 = vmatprep.subr.mxu0 0.0
    %1479 = vmatpush1.msra.mxu0 %v1200
    %1480 = vmatprep.subr.mxu0 0.0
    %1481 = vmatpush1.msra.mxu0 %v1201
    %1482 = vmatprep.subr.mxu0 0.0
    %1483 = vmatpush1.msra.mxu0 %v1202
    %1484 = vmatprep.mubr.f32.mxu0 %v1074
    %1485 = vmatmul.mubr.f32.gmra.mrb[0].mxu0 %v1073
    %v1486 = vpop.f32.mrb[0].mxu0
    %v1487 = vadd.f32 %v1417, %v1486
    %v1488 = vpop.f32.mrb[0].mxu0
    %1489 = vdwg.mxu0
    %vm1490 = vcmp.gt.f32.partialorder %v1487, 0.0
    %v1491 = vmul.f32 %v1487, 0.01
    %v1492 = vsel %vm1490, %v1487, %v1491
    %v1493 = vld [vmem:[#allocation11] sm:$0xff]
    %v1494 = vld [vmem:[#allocation11 + $0x8] sm:$0xff]
    %v1495 = vld [vmem:[#allocation11 + $0x10] sm:$0xff]
    %v1496 = vld [vmem:[#allocation11 + $0x18] sm:$0xff]
    %v1497 = vld [vmem:[#allocation11 + $0x20] sm:$0xff]
    %v1498 = vld [vmem:[#allocation11 + $0x28] sm:$0xff]
    %v1499 = vld [vmem:[#allocation11 + $0x30] sm:$0xff]
    %v1500 = vld [vmem:[#allocation11 + $0x38] sm:$0xff]
    %v1501 = vld [vmem:[#allocation11 + $0x40] sm:$0xff]
    %v1502 = vld [vmem:[#allocation11 + $0x48] sm:$0xff]
    %v1503 = vld [vmem:[#allocation11 + $0x50] sm:$0xff]
    %v1504 = vld [vmem:[#allocation11 + $0x58] sm:$0xff]
    %v1505 = vld [vmem:[#allocation11 + $0x60] sm:$0xff]
    %v1506 = vld [vmem:[#allocation11 + $0x68] sm:$0xff]
    %v1507 = vld [vmem:[#allocation11 + $0x70] sm:$0xff]
    %v1508 = vld [vmem:[#allocation11 + $0x78] sm:$0xff]
    %v1509 = vld [vmem:[#allocation13] sm:$0x1]
    %v1511 = vlaneseq
    %v1512 = vshrl.u32 %v1511, 7
    %v1513 = vsub.s32 0, %v1512
    %v1514 = vrot.slane %v1509, %v1513
    %1516 = vmatprep.subr.mxu0 0.0
    %1517 = vmatpush1.msra.mxu0 %v1493
    %1518 = vmatprep.subr.mxu0 0.0
    %1519 = vmatpush1.msra.mxu0 %v1494
    %1520 = vmatprep.subr.mxu0 0.0
    %1521 = vmatpush1.msra.mxu0 %v1495
    %1522 = vmatprep.subr.mxu0 0.0
    %1523 = vmatpush1.msra.mxu0 %v1496
    %1524 = vmatprep.subr.mxu0 0.0
    %1525 = vmatpush1.msra.mxu0 %v1497
    %1526 = vmatprep.subr.mxu0 0.0
    %1527 = vmatpush1.msra.mxu0 %v1498
    %1528 = vmatprep.subr.mxu0 0.0
    %1529 = vmatpush1.msra.mxu0 %v1499
    %1530 = vmatprep.subr.mxu0 0.0
    %1531 = vmatpush1.msra.mxu0 %v1500
    %1532 = vmatprep.subr.mxu0 0.0
    %1533 = vmatpush1.msra.mxu0 %v1501
    %1534 = vmatprep.subr.mxu0 0.0
    %1535 = vmatpush1.msra.mxu0 %v1502
    %1536 = vmatprep.subr.mxu0 0.0
    %1537 = vmatpush1.msra.mxu0 %v1503
    %1538 = vmatprep.subr.mxu0 0.0
    %1539 = vmatpush1.msra.mxu0 %v1504
    %1540 = vmatprep.subr.mxu0 0.0
    %1541 = vmatpush1.msra.mxu0 %v1505
    %1542 = vmatprep.subr.mxu0 0.0
    %1543 = vmatpush1.msra.mxu0 %v1506
    %1544 = vmatprep.subr.mxu0 0.0
    %1545 = vmatpush1.msra.mxu0 %v1507
    %1546 = vmatprep.subr.mxu0 0.0
    %1547 = vmatpush1.msra.mxu0 %v1508
    %1548 = vmatprep.subr.mxu0 0.0
    %1549 = vmatpush1.msra.mxu0 0.0
    %1550 = vmatprep.subr.mxu0 0.0
    %1551 = vmatpush1.msra.mxu0 0.0
    %1552 = vmatprep.subr.mxu0 0.0
    %1553 = vmatpush1.msra.mxu0 0.0
    %1554 = vmatprep.subr.mxu0 0.0
    %1555 = vmatpush1.msra.mxu0 0.0
    %1556 = vmatprep.subr.mxu0 0.0
    %1557 = vmatpush1.msra.mxu0 0.0
    %1558 = vmatprep.subr.mxu0 0.0
    %1559 = vmatpush1.msra.mxu0 0.0
    %1560 = vmatprep.subr.mxu0 0.0
    %1561 = vmatpush1.msra.mxu0 0.0
    %1562 = vmatprep.subr.mxu0 0.0
    %1563 = vmatpush1.msra.mxu0 0.0
    %1564 = vmatprep.subr.mxu0 0.0
    %1565 = vmatpush1.msra.mxu0 0.0
    %1566 = vmatprep.subr.mxu0 0.0
    %1567 = vmatpush1.msra.mxu0 0.0
    %1568 = vmatprep.subr.mxu0 0.0
    %1569 = vmatpush1.msra.mxu0 0.0
    %1570 = vmatprep.subr.mxu0 0.0
    %1571 = vmatpush1.msra.mxu0 0.0
    %1572 = vmatprep.subr.mxu0 0.0
    %1573 = vmatpush1.msra.mxu0 0.0
    %1574 = vmatprep.subr.mxu0 0.0
    %1575 = vmatpush1.msra.mxu0 0.0
    %1576 = vmatprep.subr.mxu0 0.0
    %1577 = vmatpush1.msra.mxu0 0.0
    %1578 = vmatprep.subr.mxu0 0.0
    %1579 = vmatpush1.msra.mxu0 0.0
    %1580 = vmatprep.mubr.f32.mxu0 0.0
    %1581 = vmatmul.mubr.f32.gmra.mrb[0].mxu0 %v1492
    %v1582 = vpop.f32.mrb[0].mxu0
    %v1583 = vadd.f32 %v1514, %v1582
    %v1584 = vpop.f32.mrb[0].mxu0
    %1585 = vdwg.mxu0
    %1586 = vxpose.xlu0.b32.start [1/16] %v1583, 128
    %1587 = vxpose.xlu0.b32.cont [2/16] 0.0, 128
    %1588 = vxpose.xlu0.b32.cont [3/16] 0.0, 128
    %1589 = vxpose.xlu0.b32.cont [4/16] 0.0, 128
    %1590 = vxpose.xlu0.b32.cont [5/16] 0.0, 128
    %1591 = vxpose.xlu0.b32.cont [6/16] 0.0, 128
    %1592 = vxpose.xlu0.b32.cont [7/16] 0.0, 128
    %1593 = vxpose.xlu0.b32.cont [8/16] 0.0, 128
    %1594 = vxpose.xlu0.b32.cont [9/16] 0.0, 128
    %1595 = vxpose.xlu0.b32.cont [10/16] 0.0, 128
    %1596 = vxpose.xlu0.b32.cont [11/16] 0.0, 128
    %1597 = vxpose.xlu0.b32.cont [12/16] 0.0, 128
    %1598 = vxpose.xlu0.b32.cont [13/16] 0.0, 128
    %1599 = vxpose.xlu0.b32.cont [14/16] 0.0, 128
    %1600 = vxpose.xlu0.b32.cont [15/16] 0.0, 128
    %1601 = vxpose.xlu0.b32.end [16/16] 0.0, 128
    %v1602 = vpop.trf.xlu0
    %v1603 = vpop.trf.xlu0
    %v1604 = vpop.trf.xlu0
    %v1605 = vpop.trf.xlu0
    %v1606 = vpop.trf.xlu0
    %v1607 = vpop.trf.xlu0
    %v1608 = vpop.trf.xlu0
    %v1609 = vpop.trf.xlu0
    %v1610 = vpop.trf.xlu0
    %v1611 = vpop.trf.xlu0
    %v1612 = vpop.trf.xlu0
    %v1613 = vpop.trf.xlu0
    %v1614 = vpop.trf.xlu0
    %v1615 = vpop.trf.xlu0
    %v1616 = vpop.trf.xlu0
    %v1617 = vpop.trf.xlu0
    %v1618 = vxor.u32 %v1602, 2147483648
    %v1619 = vmul.f32 %v1618, 1.442695
    %v1620 = vpow.pop %v1619
    %v1621 = vadd.f32 %v1620, 1.0
    %v1622 = vrcp.pop %v1621
    %v1623 = vmul.f32 1.0, %v1622
    %vm1624 = vcmask 57344
    %1625 = vst.msk [vmem:[#allocation14] sm:$0x1] %vm1624, %v1623
    // Predicated region
    $region58: #{tpu_custom_call.1} parent=1 // pred_check
      _
    $region59: #{tpu_custom_call.1} parent=1 // pred_check_branch
      %1627 = sbr.rel (0) target = $region61
    $region60: #{tpu_custom_call.1} parent=1 // pred_region
      %s1629 = ssub.s32 16, 16
      %1630 = vsyncadd [#allocation4], %s1629
      %s1632 = sshll.u32 [#allocation14], 4
      %s1633 = int_to_ptr.vmem [resolvable:$true] %s1632
      %1635 = dma.vmem_to_hbm [thread:$0]  %s1633, 16, %s7, [#allocation4]
    $region61: #{tpu_custom_call.1} parent=1 // pred_fallthru
      _
    // Predicated region
    $region62: #{tpu_custom_call.1} parent=1 // pred_check
      _
    $region63: #{tpu_custom_call.1} parent=1 // pred_check_branch
      %1637 = sbr.rel (0) target = $region65
    $region64: #{tpu_custom_call.1} parent=1 // pred_region
      %1638 = dma.done [#allocation4], 16
    $region65: #{tpu_custom_call.1} parent=1 // pred_fallthru
      _
    %1639 = vsyncpa [#allocation3], 1
    %1640 = vsyncpa [#allocation6], 1
    %1641 = vsyncpa [#allocation9], 1
    %1642 = vsyncpa [#allocation12], 1
    %1643 = vsyncpa [#allocation4], 1

</llo_original>
